<compile_context>
chip_gen: v6e
topology: v6e:2x2x1
jax: 0.10.0
libtpu: 0.0.40
codegen_flags: <defaults>
</compile_context>

<pallas_src>
import functools

import jax
import jax.numpy as jnp
from jax import lax
from jax.experimental import pallas as pl
from jax.experimental.pallas import tpu as pltpu

_VMEM_LIMIT = 32 * 1024 * 1024  # works on v5e (default 16 MiB) / v6e / v7x with headroom


def _seq_tile(n):
    """Sequence-tile length that divides n and keeps blocks (8,128)-legal."""
    for t in (512, 256, 128):
        if n % t == 0:
            return t
    return n  # small / irregular sequences: one full-length block (always legal)


# --------------------------------------------------------------------------
# Kernel A: LayerNorm + per-head QKV projection (scale folded into q)
# --------------------------------------------------------------------------
def ln_qkv_kernel(x_ref, gamma_ref, beta_ref, w_ref, q_ref, k_ref, v_ref,
                  *, heads, scale, eps):
    x = x_ref[0].astype(jnp.float32)                       # (tn, D)

    # LayerNorm (biased variance, eps inside rsqrt) in f32
    mean = jnp.mean(x, axis=-1, keepdims=True)
    xc = x - mean
    var = jnp.mean(xc * xc, axis=-1, keepdims=True)
    xn = xc * lax.rsqrt(var + eps)
    xn = xn * gamma_ref[...].astype(jnp.float32) + beta_ref[...].astype(jnp.float32)

    # Feed the MXU in the weight dtype (bf16 weights -> bf16 MXU, f32 accum)
    xn = xn.astype(w_ref.dtype)

    # Per-head projections: leading-axis slices of the head-major weight ref,
    # direct writes to the (1, H, tn, Dh) outputs -> no transposes anywhere.
    for h in range(heads):
        q_h = jnp.dot(xn, w_ref[0, h], preferred_element_type=jnp.float32)
        k_h = jnp.dot(xn, w_ref[1, h], preferred_element_type=jnp.float32)
        v_h = jnp.dot(xn, w_ref[2, h], preferred_element_type=jnp.float32)
        q_ref[0, h] = (q_h * scale).astype(q_ref.dtype)    # fold softmax scale into q
        k_ref[0, h] = k_h.astype(k_ref.dtype)
        v_ref[0, h] = v_h.astype(v_ref.dtype)


# --------------------------------------------------------------------------
# Kernel B: flash attention (online softmax, kv axis is the reduction)
# --------------------------------------------------------------------------
def flash_attn_kernel(q_ref, k_ref, v_ref, o_ref, m_sc, l_sc, acc_sc):
    ki = pl.program_id(3)

    @pl.when(ki == 0)
    def _():
        m_sc[...] = jnp.full_like(m_sc, -jnp.inf)
        l_sc[...] = jnp.zeros_like(l_sc)
        acc_sc[...] = jnp.zeros_like(acc_sc)

    q = q_ref[0, 0]                                        # (tq, Dh), pre-scaled
    k = k_ref[0, 0]                                        # (tk, Dh)
    v = v_ref[0, 0]                                        # (tk, Dh)

    # QK^T: contract over Dh without transposing k
    s = lax.dot_general(q, k, (((1,), (1,)), ((), ())),
                        preferred_element_type=jnp.float32)  # (tq, tk)

    m_prev = m_sc[...]
    m_new = jnp.maximum(m_prev, jnp.max(s, axis=-1, keepdims=True))
    alpha = jnp.exp(m_prev - m_new)
    p = jnp.exp(s - m_new)

    l_sc[...] = alpha * l_sc[...] + jnp.sum(p, axis=-1, keepdims=True)
    acc_sc[...] = alpha * acc_sc[...] + jnp.dot(p.astype(v.dtype), v,
                                                preferred_element_type=jnp.float32)
    m_sc[...] = m_new

    @pl.when(ki == pl.num_programs(3) - 1)
    def _():
        inv_l = pl.reciprocal(l_sc[...], approx=True)      # EUP slot, (tq,1) only
        o_ref[0, 0] = (acc_sc[...] * inv_l).astype(o_ref.dtype)


# --------------------------------------------------------------------------
# Kernel C: 'b h n d -> b n (h d)' + output projection, as per-head accumulation
# --------------------------------------------------------------------------
def out_proj_kernel(ao_ref, w_ref, y_ref, *, heads):
    acc = None
    for h in range(heads):
        a = ao_ref[0, h]                                   # (tn, Dh)
        w = w_ref[h]                                       # (Dh, D)
        contrib = jnp.dot(a.astype(w.dtype), w, preferred_element_type=jnp.float32)
        acc = contrib if acc is None else acc + contrib
    y_ref[0] = acc.astype(y_ref.dtype)


# --------------------------------------------------------------------------
# Wrapper
# --------------------------------------------------------------------------
def attention_forward(x, gamma, beta, w_qkv, w_out, *, heads, dim_head):
    B, N, D = x.shape
    inner = heads * dim_head
    scale = float(dim_head) ** -0.5
    eps = 1e-5
    dtype = x.dtype
    itemsize = jnp.dtype(dtype).itemsize

    # Head-major weight layouts (one-time, wrapper side) so all in-kernel head
    # slicing is on leading axes.
    w_qkv_h = w_qkv.reshape(D, 3, heads, dim_head).transpose(1, 2, 0, 3)  # (3,H,D,Dh)
    w_out_h = w_out.reshape(heads, dim_head, D)                            # (H,Dh,D)
    gamma2 = gamma.reshape(1, D)
    beta2 = beta.reshape(1, D)

    tn = _seq_tile(N)
    tq = _seq_tile(N)
    tk = _seq_tile(N)

    cparams = lambda sem: pltpu.CompilerParams(dimension_semantics=sem,
                                               vmem_limit_bytes=_VMEM_LIMIT)

    # ---- Kernel A: LayerNorm + QKV ----
    cost_a = pl.CostEstimate(
        flops=int(2 * B * N * D * 3 * inner + 8 * B * N * D),
        transcendentals=int(B * N),
        bytes_accessed=int((B * N * D + 2 * D + 3 * inner * D + 3 * B * N * inner) * itemsize))

    qkv_shape = jax.ShapeDtypeStruct((B, heads, N, dim_head), dtype)
    q, k, v = pl.pallas_call(
        functools.partial(ln_qkv_kernel, heads=heads, scale=scale, eps=eps),
        out_shape=(qkv_shape, qkv_shape, qkv_shape),
        grid_spec=pltpu.PrefetchScalarGridSpec(
            num_scalar_prefetch=0,
            grid=(B, N // tn),
            in_specs=[
                pl.BlockSpec((1, tn, D), lambda b, n: (b, n, 0)),               # x
                pl.BlockSpec((1, D), lambda b, n: (0, 0)),                      # gamma
                pl.BlockSpec((1, D), lambda b, n: (0, 0)),                      # beta
                pl.BlockSpec((3, heads, D, dim_head), lambda b, n: (0, 0, 0, 0)),  # w_qkv
            ],
            out_specs=[
                pl.BlockSpec((1, heads, tn, dim_head), lambda b, n: (b, 0, n, 0)),
                pl.BlockSpec((1, heads, tn, dim_head), lambda b, n: (b, 0, n, 0)),
                pl.BlockSpec((1, heads, tn, dim_head), lambda b, n: (b, 0, n, 0)),
            ],
        ),
        compiler_params=cparams(("parallel", "parallel")),
        cost_estimate=cost_a,
    )(x, gamma2, beta2, w_qkv_h)

    # ---- Kernel B: flash attention ----
    cost_b = pl.CostEstimate(
        flops=int(4 * B * heads * N * N * dim_head + 6 * B * heads * N * N),
        transcendentals=int(B * heads * N * N),
        bytes_accessed=int((2 * B * heads * N * dim_head * (1 + N // tq)
                            + 2 * B * heads * N * dim_head) * itemsize))

    attn_out = pl.pallas_call(
        flash_attn_kernel,
        out_shape=jax.ShapeDtypeStruct((B, heads, N, dim_head), dtype),
        grid_spec=pltpu.PrefetchScalarGridSpec(
            num_scalar_prefetch=0,
            grid=(B, heads, N // tq, N // tk),
            in_specs=[
                pl.BlockSpec((1, 1, tq, dim_head), lambda b, h, qi, ki: (b, h, qi, 0)),
                pl.BlockSpec((1, 1, tk, dim_head), lambda b, h, qi, ki: (b, h, ki, 0)),
                pl.BlockSpec((1, 1, tk, dim_head), lambda b, h, qi, ki: (b, h, ki, 0)),
            ],
            out_specs=pl.BlockSpec((1, 1, tq, dim_head),
                                   lambda b, h, qi, ki: (b, h, qi, 0)),
            scratch_shapes=[
                pltpu.VMEM((tq, 1), jnp.float32),          # running max
                pltpu.VMEM((tq, 1), jnp.float32),          # running sum
                pltpu.VMEM((tq, dim_head), jnp.float32),   # output accumulator
            ],
        ),
        compiler_params=cparams(("parallel", "parallel", "parallel", "arbitrary")),
        cost_estimate=cost_b,
    )(q, k, v)

    # ---- Kernel C: merge heads + output projection ----
    cost_c = pl.CostEstimate(
        flops=int(2 * B * N * inner * D),
        transcendentals=0,
        bytes_accessed=int((B * N * inner + inner * D + B * N * D) * itemsize))

    y = pl.pallas_call(
        functools.partial(out_proj_kernel, heads=heads),
        out_shape=jax.ShapeDtypeStruct((B, N, D), dtype),
        grid_spec=pltpu.PrefetchScalarGridSpec(
            num_scalar_prefetch=0,
            grid=(B, N // tn),
            in_specs=[
                pl.BlockSpec((1, heads, tn, dim_head), lambda b, n: (b, 0, n, 0)),
                pl.BlockSpec((heads, dim_head, D), lambda b, n: (0, 0, 0)),
            ],
            out_specs=pl.BlockSpec((1, tn, D), lambda b, n: (b, n, 0)),
        ),
        compiler_params=cparams(("parallel", "parallel")),
        cost_estimate=cost_c,
    )(attn_out, w_out_h)

    return y


# --------------------------------------------------------------------------
# Pure-JAX reference matching the PyTorch module semantics
# --------------------------------------------------------------------------
def reference_forward(x, gamma, beta, w_qkv, w_out, *, heads, dim_head):
    B, N, D = x.shape
    inner = heads * dim_head
    scale = float(dim_head) ** -0.5
    mean = jnp.mean(x, axis=-1, keepdims=True)
    var = jnp.mean((x - mean) ** 2, axis=-1, keepdims=True)
    xn = (x - mean) / jnp.sqrt(var + 1e-5) * gamma + beta
    qkv = xn @ w_qkv
    q, k, v = jnp.split(qkv, 3, axis=-1)

    def split_heads(t):
        return t.reshape(B, N, heads, dim_head).transpose(0, 2, 1, 3)

    q, k, v = map(split_heads, (q, k, v))
    dots = jnp.einsum('bhnd,bhmd->bhnm', q, k) * scale
    attn = jax.nn.softmax(dots, axis=-1)
    out = jnp.einsum('bhnm,bhmd->bhnd', attn, v)
    out = out.transpose(0, 2, 1, 3).reshape(B, N, inner)
    return out @ w_out


if __name__ == "__main__":
    # Small shapes consistent with the module: batch=2, seq=8, dim=32, heads=4, dim_head=16
    B, N, D = 2, 8, 32
    heads, dim_head = 4, 16
    inner = heads * dim_head

    key = jax.random.PRNGKey(0)
    kx, kg, kb, kq, ko = jax.random.split(key, 5)

    x = jax.random.normal(kx, (B, N, D), dtype=jnp.float32)
    gamma = jnp.ones((D,), jnp.float32) + 0.1 * jax.random.normal(kg, (D,), jnp.float32)
    beta = 0.1 * jax.random.normal(kb, (D,), jnp.float32)
    w_qkv = jax.random.normal(kq, (D, 3 * inner), jnp.float32) / jnp.sqrt(D)
    w_out = jax.random.normal(ko, (inner, D), jnp.float32) / jnp.sqrt(inner)

    y = attention_forward(x, gamma, beta, w_qkv, w_out,
                          heads=heads, dim_head=dim_head)
    jax.block_until_ready(y)

    y_ref = reference_forward(x, gamma, beta, w_qkv, w_out,
                              heads=heads, dim_head=dim_head)
    # Tolerance loosened vs. exact-f32 because the softmax normalization uses
    # pl.reciprocal(approx=True) (EUP approximate reciprocal, ~1e-3 rel err).
    assert jnp.allclose(y, y_ref, atol=1e-2, rtol=1e-2), \
        f"max err {jnp.max(jnp.abs(y - y_ref))}"

    print("KERNEL_OK")
</pallas_src>

<mosaic_0001>
module attributes {stable_mosaic.version = 11 : i64} {
  func.func @ln_qkv_kernel(%arg0: i32, %arg1: i32, %arg2: memref<1x8x32xf32, #tpu.memory_space<vmem>>, %arg3: memref<1x32xf32, #tpu.memory_space<vmem>>, %arg4: memref<1x32xf32, #tpu.memory_space<vmem>>, %arg5: memref<3x4x32x16xf32, #tpu.memory_space<vmem>>, %arg6: memref<1x4x8x16xf32, #tpu.memory_space<vmem>>, %arg7: memref<1x4x8x16xf32, #tpu.memory_space<vmem>>, %arg8: memref<1x4x8x16xf32, #tpu.memory_space<vmem>>) attributes {dimension_semantics = [#tpu.dimension_semantics<parallel>, #tpu.dimension_semantics<parallel>], iteration_bounds = array<i64: 2, 1>, scalar_prefetch = 0 : i64, scratch_operands = 0 : i64, tpu.core_type = #tpu.core_type<tc>, window_params = [{transform_indices = @transform_0, window_bounds = array<i64: 1, 8, 32>}, {pipeline_mode = #tpu.pipeline_mode<synchronous>, transform_indices = @transform_1, window_bounds = array<i64: 1, 32>}, {pipeline_mode = #tpu.pipeline_mode<synchronous>, transform_indices = @transform_2, window_bounds = array<i64: 1, 32>}, {pipeline_mode = #tpu.pipeline_mode<synchronous>, transform_indices = @transform_3, window_bounds = array<i64: 3, 4, 32, 16>}, {transform_indices = @transform_4, window_bounds = array<i64: 1, 4, 8, 16>}, {transform_indices = @transform_5, window_bounds = array<i64: 1, 4, 8, 16>}, {transform_indices = @transform_6, window_bounds = array<i64: 1, 4, 8, 16>}]} {
    %c0 = arith.constant 0 : index
    %c0_0 = arith.constant 0 : index
    %c0_1 = arith.constant 0 : index
    %0 = vector.load %arg2[%c0, %c0_0, %c0_1] : memref<1x8x32xf32, #tpu.memory_space<vmem>>, vector<1x8x32xf32>
    %1 = vector.shape_cast %0 : vector<1x8x32xf32> to vector<8x32xf32>
    %cst = arith.constant dense<0.000000e+00> : vector<8xf32>
    %2 = vector.multi_reduction <add>, %1, %cst [1] : vector<8x32xf32> to vector<8xf32>
    %3 = vector.shape_cast %2 : vector<8xf32> to vector<8x1xf32>
    %cst_2 = arith.constant 3.200000e+01 : f32
    %4 = vector.broadcast %cst_2 : f32 to vector<8x1xf32>
    %5 = arith.divf %3, %4 : vector<8x1xf32>
    %6 = vector.broadcast %5 : vector<8x1xf32> to vector<8x32xf32>
    %7 = arith.subf %1, %6 : vector<8x32xf32>
    %8 = arith.mulf %7, %7 : vector<8x32xf32>
    %cst_3 = arith.constant dense<0.000000e+00> : vector<8xf32>
    %9 = vector.multi_reduction <add>, %8, %cst_3 [1] : vector<8x32xf32> to vector<8xf32>
    %10 = vector.shape_cast %9 : vector<8xf32> to vector<8x1xf32>
    %cst_4 = arith.constant 3.200000e+01 : f32
    %11 = vector.broadcast %cst_4 : f32 to vector<8x1xf32>
    %12 = arith.divf %10, %11 : vector<8x1xf32>
    %cst_5 = arith.constant 9.99999974E-6 : f32
    %13 = vector.broadcast %cst_5 : f32 to vector<8x1xf32>
    %14 = arith.addf %12, %13 : vector<8x1xf32>
    %15 = math.rsqrt %14 : vector<8x1xf32>
    %16 = vector.broadcast %15 : vector<8x1xf32> to vector<8x32xf32>
    %17 = arith.mulf %7, %16 : vector<8x32xf32>
    %c0_6 = arith.constant 0 : index
    %c0_7 = arith.constant 0 : index
    %18 = vector.load %arg3[%c0_6, %c0_7] : memref<1x32xf32, #tpu.memory_space<vmem>>, vector<1x32xf32>
    %19 = vector.broadcast %18 : vector<1x32xf32> to vector<8x32xf32>
    %20 = arith.mulf %17, %19 : vector<8x32xf32>
    %c0_8 = arith.constant 0 : index
    %c0_9 = arith.constant 0 : index
    %21 = vector.load %arg4[%c0_8, %c0_9] : memref<1x32xf32, #tpu.memory_space<vmem>>, vector<1x32xf32>
    %22 = vector.broadcast %21 : vector<1x32xf32> to vector<8x32xf32>
    %23 = arith.addf %20, %22 : vector<8x32xf32>
    %c0_10 = arith.constant 0 : index
    %c0_11 = arith.constant 0 : index
    %c0_12 = arith.constant 0 : index
    %c0_13 = arith.constant 0 : index
    %24 = vector.load %arg5[%c0_10, %c0_11, %c0_12, %c0_13] : memref<3x4x32x16xf32, #tpu.memory_space<vmem>>, vector<1x1x32x16xf32>
    %25 = vector.shape_cast %24 : vector<1x1x32x16xf32> to vector<32x16xf32>
    %cst_14 = arith.constant dense<0.000000e+00> : vector<8x16xf32>
    %26 = tpu.matmul %23, %25, %cst_14 {dimension_numbers = #tpu.dot_dimension_numbers<[1], [0], [0], [1], [0, 0, 1, 1], [], []>} : vector<8x32xf32>, vector<32x16xf32>, vector<8x16xf32> -> vector<8x16xf32>
    %c1 = arith.constant 1 : index
    %c0_15 = arith.constant 0 : index
    %c0_16 = arith.constant 0 : index
    %c0_17 = arith.constant 0 : index
    %27 = vector.load %arg5[%c1, %c0_15, %c0_16, %c0_17] : memref<3x4x32x16xf32, #tpu.memory_space<vmem>>, vector<1x1x32x16xf32>
    %28 = vector.shape_cast %27 : vector<1x1x32x16xf32> to vector<32x16xf32>
    %cst_18 = arith.constant dense<0.000000e+00> : vector<8x16xf32>
    %29 = tpu.matmul %23, %28, %cst_18 {dimension_numbers = #tpu.dot_dimension_numbers<[1], [0], [0], [1], [0, 0, 1, 1], [], []>} : vector<8x32xf32>, vector<32x16xf32>, vector<8x16xf32> -> vector<8x16xf32>
    %c2 = arith.constant 2 : index
    %c0_19 = arith.constant 0 : index
    %c0_20 = arith.constant 0 : index
    %c0_21 = arith.constant 0 : index
    %30 = vector.load %arg5[%c2, %c0_19, %c0_20, %c0_21] : memref<3x4x32x16xf32, #tpu.memory_space<vmem>>, vector<1x1x32x16xf32>
    %31 = vector.shape_cast %30 : vector<1x1x32x16xf32> to vector<32x16xf32>
    %cst_22 = arith.constant dense<0.000000e+00> : vector<8x16xf32>
    %32 = tpu.matmul %23, %31, %cst_22 {dimension_numbers = #tpu.dot_dimension_numbers<[1], [0], [0], [1], [0, 0, 1, 1], [], []>} : vector<8x32xf32>, vector<32x16xf32>, vector<8x16xf32> -> vector<8x16xf32>
    %cst_23 = arith.constant 2.500000e-01 : f32
    %33 = vector.broadcast %cst_23 : f32 to vector<8x16xf32>
    %34 = arith.mulf %26, %33 : vector<8x16xf32>
    %c0_24 = arith.constant 0 : index
    %c0_25 = arith.constant 0 : index
    %c0_26 = arith.constant 0 : index
    %c0_27 = arith.constant 0 : index
    %35 = vector.load %arg6[%c0_24, %c0_25, %c0_26, %c0_27] : memref<1x4x8x16xf32, #tpu.memory_space<vmem>>, vector<1x1x8x16xf32>
    %36 = vector.shape_cast %35 : vector<1x1x8x16xf32> to vector<8x16xf32>
    %37 = vector.shape_cast %34 : vector<8x16xf32> to vector<1x1x8x16xf32>
    tpu.vector_store %arg6[%c0_24, %c0_25, %c0_26, %c0_27], %37 {strides = array<i32>} : memref<1x4x8x16xf32, #tpu.memory_space<vmem>>, vector<1x1x8x16xf32>,
    %c0_28 = arith.constant 0 : index
    %c0_29 = arith.constant 0 : index
    %c0_30 = arith.constant 0 : index
    %c0_31 = arith.constant 0 : index
    %38 = vector.load %arg7[%c0_28, %c0_29, %c0_30, %c0_31] : memref<1x4x8x16xf32, #tpu.memory_space<vmem>>, vector<1x1x8x16xf32>
    %39 = vector.shape_cast %38 : vector<1x1x8x16xf32> to vector<8x16xf32>
    %40 = vector.shape_cast %29 : vector<8x16xf32> to vector<1x1x8x16xf32>
    tpu.vector_store %arg7[%c0_28, %c0_29, %c0_30, %c0_31], %40 {strides = array<i32>} : memref<1x4x8x16xf32, #tpu.memory_space<vmem>>, vector<1x1x8x16xf32>,
    %c0_32 = arith.constant 0 : index
    %c0_33 = arith.constant 0 : index
    %c0_34 = arith.constant 0 : index
    %c0_35 = arith.constant 0 : index
    %41 = vector.load %arg8[%c0_32, %c0_33, %c0_34, %c0_35] : memref<1x4x8x16xf32, #tpu.memory_space<vmem>>, vector<1x1x8x16xf32>
    %42 = vector.shape_cast %41 : vector<1x1x8x16xf32> to vector<8x16xf32>
    %43 = vector.shape_cast %32 : vector<8x16xf32> to vector<1x1x8x16xf32>
    tpu.vector_store %arg8[%c0_32, %c0_33, %c0_34, %c0_35], %43 {strides = array<i32>} : memref<1x4x8x16xf32, #tpu.memory_space<vmem>>, vector<1x1x8x16xf32>,
    %c0_36 = arith.constant 0 : index
    %c1_37 = arith.constant 1 : index
    %c0_38 = arith.constant 0 : index
    %c0_39 = arith.constant 0 : index
    %44 = vector.load %arg5[%c0_36, %c1_37, %c0_38, %c0_39] : memref<3x4x32x16xf32, #tpu.memory_space<vmem>>, vector<1x1x32x16xf32>
    %45 = vector.shape_cast %44 : vector<1x1x32x16xf32> to vector<32x16xf32>
    %cst_40 = arith.constant dense<0.000000e+00> : vector<8x16xf32>
    %46 = tpu.matmul %23, %45, %cst_40 {dimension_numbers = #tpu.dot_dimension_numbers<[1], [0], [0], [1], [0, 0, 1, 1], [], []>} : vector<8x32xf32>, vector<32x16xf32>, vector<8x16xf32> -> vector<8x16xf32>
    %c1_41 = arith.constant 1 : index
    %c1_42 = arith.constant 1 : index
    %c0_43 = arith.constant 0 : index
    %c0_44 = arith.constant 0 : index
    %47 = vector.load %arg5[%c1_41, %c1_42, %c0_43, %c0_44] : memref<3x4x32x16xf32, #tpu.memory_space<vmem>>, vector<1x1x32x16xf32>
    %48 = vector.shape_cast %47 : vector<1x1x32x16xf32> to vector<32x16xf32>
    %cst_45 = arith.constant dense<0.000000e+00> : vector<8x16xf32>
    %49 = tpu.matmul %23, %48, %cst_45 {dimension_numbers = #tpu.dot_dimension_numbers<[1], [0], [0], [1], [0, 0, 1, 1], [], []>} : vector<8x32xf32>, vector<32x16xf32>, vector<8x16xf32> -> vector<8x16xf32>
    %c2_46 = arith.constant 2 : index
    %c1_47 = arith.constant 1 : index
    %c0_48 = arith.constant 0 : index
    %c0_49 = arith.constant 0 : index
    %50 = vector.load %arg5[%c2_46, %c1_47, %c0_48, %c0_49] : memref<3x4x32x16xf32, #tpu.memory_space<vmem>>, vector<1x1x32x16xf32>
    %51 = vector.shape_cast %50 : vector<1x1x32x16xf32> to vector<32x16xf32>
    %cst_50 = arith.constant dense<0.000000e+00> : vector<8x16xf32>
    %52 = tpu.matmul %23, %51, %cst_50 {dimension_numbers = #tpu.dot_dimension_numbers<[1], [0], [0], [1], [0, 0, 1, 1], [], []>} : vector<8x32xf32>, vector<32x16xf32>, vector<8x16xf32> -> vector<8x16xf32>
    %cst_51 = arith.constant 2.500000e-01 : f32
    %53 = vector.broadcast %cst_51 : f32 to vector<8x16xf32>
    %54 = arith.mulf %46, %53 : vector<8x16xf32>
    %c0_52 = arith.constant 0 : index
    %c1_53 = arith.constant 1 : index
    %c0_54 = arith.constant 0 : index
    %c0_55 = arith.constant 0 : index
    %55 = vector.load %arg6[%c0_52, %c1_53, %c0_54, %c0_55] : memref<1x4x8x16xf32, #tpu.memory_space<vmem>>, vector<1x1x8x16xf32>
    %56 = vector.shape_cast %55 : vector<1x1x8x16xf32> to vector<8x16xf32>
    %57 = vector.shape_cast %54 : vector<8x16xf32> to vector<1x1x8x16xf32>
    tpu.vector_store %arg6[%c0_52, %c1_53, %c0_54, %c0_55], %57 {strides = array<i32>} : memref<1x4x8x16xf32, #tpu.memory_space<vmem>>, vector<1x1x8x16xf32>,
    %c0_56 = arith.constant 0 : index
    %c1_57 = arith.constant 1 : index
    %c0_58 = arith.constant 0 : index
    %c0_59 = arith.constant 0 : index
    %58 = vector.load %arg7[%c0_56, %c1_57, %c0_58, %c0_59] : memref<1x4x8x16xf32, #tpu.memory_space<vmem>>, vector<1x1x8x16xf32>
    %59 = vector.shape_cast %58 : vector<1x1x8x16xf32> to vector<8x16xf32>
    %60 = vector.shape_cast %49 : vector<8x16xf32> to vector<1x1x8x16xf32>
    tpu.vector_store %arg7[%c0_56, %c1_57, %c0_58, %c0_59], %60 {strides = array<i32>} : memref<1x4x8x16xf32, #tpu.memory_space<vmem>>, vector<1x1x8x16xf32>,
    %c0_60 = arith.constant 0 : index
    %c1_61 = arith.constant 1 : index
    %c0_62 = arith.constant 0 : index
    %c0_63 = arith.constant 0 : index
    %61 = vector.load %arg8[%c0_60, %c1_61, %c0_62, %c0_63] : memref<1x4x8x16xf32, #tpu.memory_space<vmem>>, vector<1x1x8x16xf32>
    %62 = vector.shape_cast %61 : vector<1x1x8x16xf32> to vector<8x16xf32>
    %63 = vector.shape_cast %52 : vector<8x16xf32> to vector<1x1x8x16xf32>
    tpu.vector_store %arg8[%c0_60, %c1_61, %c0_62, %c0_63], %63 {strides = array<i32>} : memref<1x4x8x16xf32, #tpu.memory_space<vmem>>, vector<1x1x8x16xf32>,
    %c0_64 = arith.constant 0 : index
    %c2_65 = arith.constant 2 : index
    %c0_66 = arith.constant 0 : index
    %c0_67 = arith.constant 0 : index
    %64 = vector.load %arg5[%c0_64, %c2_65, %c0_66, %c0_67] : memref<3x4x32x16xf32, #tpu.memory_space<vmem>>, vector<1x1x32x16xf32>
    %65 = vector.shape_cast %64 : vector<1x1x32x16xf32> to vector<32x16xf32>
    %cst_68 = arith.constant dense<0.000000e+00> : vector<8x16xf32>
    %66 = tpu.matmul %23, %65, %cst_68 {dimension_numbers = #tpu.dot_dimension_numbers<[1], [0], [0], [1], [0, 0, 1, 1], [], []>} : vector<8x32xf32>, vector<32x16xf32>, vector<8x16xf32> -> vector<8x16xf32>
    %c1_69 = arith.constant 1 : index
    %c2_70 = arith.constant 2 : index
    %c0_71 = arith.constant 0 : index
    %c0_72 = arith.constant 0 : index
    %67 = vector.load %arg5[%c1_69, %c2_70, %c0_71, %c0_72] : memref<3x4x32x16xf32, #tpu.memory_space<vmem>>, vector<1x1x32x16xf32>
    %68 = vector.shape_cast %67 : vector<1x1x32x16xf32> to vector<32x16xf32>
    %cst_73 = arith.constant dense<0.000000e+00> : vector<8x16xf32>
    %69 = tpu.matmul %23, %68, %cst_73 {dimension_numbers = #tpu.dot_dimension_numbers<[1], [0], [0], [1], [0, 0, 1, 1], [], []>} : vector<8x32xf32>, vector<32x16xf32>, vector<8x16xf32> -> vector<8x16xf32>
    %c2_74 = arith.constant 2 : index
    %c2_75 = arith.constant 2 : index
    %c0_76 = arith.constant 0 : index
    %c0_77 = arith.constant 0 : index
    %70 = vector.load %arg5[%c2_74, %c2_75, %c0_76, %c0_77] : memref<3x4x32x16xf32, #tpu.memory_space<vmem>>, vector<1x1x32x16xf32>
    %71 = vector.shape_cast %70 : vector<1x1x32x16xf32> to vector<32x16xf32>
    %cst_78 = arith.constant dense<0.000000e+00> : vector<8x16xf32>
    %72 = tpu.matmul %23, %71, %cst_78 {dimension_numbers = #tpu.dot_dimension_numbers<[1], [0], [0], [1], [0, 0, 1, 1], [], []>} : vector<8x32xf32>, vector<32x16xf32>, vector<8x16xf32> -> vector<8x16xf32>
    %cst_79 = arith.constant 2.500000e-01 : f32
    %73 = vector.broadcast %cst_79 : f32 to vector<8x16xf32>
    %74 = arith.mulf %66, %73 : vector<8x16xf32>
    %c0_80 = arith.constant 0 : index
    %c2_81 = arith.constant 2 : index
    %c0_82 = arith.constant 0 : index
    %c0_83 = arith.constant 0 : index
    %75 = vector.load %arg6[%c0_80, %c2_81, %c0_82, %c0_83] : memref<1x4x8x16xf32, #tpu.memory_space<vmem>>, vector<1x1x8x16xf32>
    %76 = vector.shape_cast %75 : vector<1x1x8x16xf32> to vector<8x16xf32>
    %77 = vector.shape_cast %74 : vector<8x16xf32> to vector<1x1x8x16xf32>
    tpu.vector_store %arg6[%c0_80, %c2_81, %c0_82, %c0_83], %77 {strides = array<i32>} : memref<1x4x8x16xf32, #tpu.memory_space<vmem>>, vector<1x1x8x16xf32>,
    %c0_84 = arith.constant 0 : index
    %c2_85 = arith.constant 2 : index
    %c0_86 = arith.constant 0 : index
    %c0_87 = arith.constant 0 : index
    %78 = vector.load %arg7[%c0_84, %c2_85, %c0_86, %c0_87] : memref<1x4x8x16xf32, #tpu.memory_space<vmem>>, vector<1x1x8x16xf32>
    %79 = vector.shape_cast %78 : vector<1x1x8x16xf32> to vector<8x16xf32>
    %80 = vector.shape_cast %69 : vector<8x16xf32> to vector<1x1x8x16xf32>
    tpu.vector_store %arg7[%c0_84, %c2_85, %c0_86, %c0_87], %80 {strides = array<i32>} : memref<1x4x8x16xf32, #tpu.memory_space<vmem>>, vector<1x1x8x16xf32>,
    %c0_88 = arith.constant 0 : index
    %c2_89 = arith.constant 2 : index
    %c0_90 = arith.constant 0 : index
    %c0_91 = arith.constant 0 : index
    %81 = vector.load %arg8[%c0_88, %c2_89, %c0_90, %c0_91] : memref<1x4x8x16xf32, #tpu.memory_space<vmem>>, vector<1x1x8x16xf32>
    %82 = vector.shape_cast %81 : vector<1x1x8x16xf32> to vector<8x16xf32>
    %83 = vector.shape_cast %72 : vector<8x16xf32> to vector<1x1x8x16xf32>
    tpu.vector_store %arg8[%c0_88, %c2_89, %c0_90, %c0_91], %83 {strides = array<i32>} : memref<1x4x8x16xf32, #tpu.memory_space<vmem>>, vector<1x1x8x16xf32>,
    %c0_92 = arith.constant 0 : index
    %c3 = arith.constant 3 : index
    %c0_93 = arith.constant 0 : index
    %c0_94 = arith.constant 0 : index
    %84 = vector.load %arg5[%c0_92, %c3, %c0_93, %c0_94] : memref<3x4x32x16xf32, #tpu.memory_space<vmem>>, vector<1x1x32x16xf32>
    %85 = vector.shape_cast %84 : vector<1x1x32x16xf32> to vector<32x16xf32>
    %cst_95 = arith.constant dense<0.000000e+00> : vector<8x16xf32>
    %86 = tpu.matmul %23, %85, %cst_95 {dimension_numbers = #tpu.dot_dimension_numbers<[1], [0], [0], [1], [0, 0, 1, 1], [], []>} : vector<8x32xf32>, vector<32x16xf32>, vector<8x16xf32> -> vector<8x16xf32>
    %c1_96 = arith.constant 1 : index
    %c3_97 = arith.constant 3 : index
    %c0_98 = arith.constant 0 : index
    %c0_99 = arith.constant 0 : index
    %87 = vector.load %arg5[%c1_96, %c3_97, %c0_98, %c0_99] : memref<3x4x32x16xf32, #tpu.memory_space<vmem>>, vector<1x1x32x16xf32>
    %88 = vector.shape_cast %87 : vector<1x1x32x16xf32> to vector<32x16xf32>
    %cst_100 = arith.constant dense<0.000000e+00> : vector<8x16xf32>
    %89 = tpu.matmul %23, %88, %cst_100 {dimension_numbers = #tpu.dot_dimension_numbers<[1], [0], [0], [1], [0, 0, 1, 1], [], []>} : vector<8x32xf32>, vector<32x16xf32>, vector<8x16xf32> -> vector<8x16xf32>
    %c2_101 = arith.constant 2 : index
    %c3_102 = arith.constant 3 : index
    %c0_103 = arith.constant 0 : index
    %c0_104 = arith.constant 0 : index
    %90 = vector.load %arg5[%c2_101, %c3_102, %c0_103, %c0_104] : memref<3x4x32x16xf32, #tpu.memory_space<vmem>>, vector<1x1x32x16xf32>
    %91 = vector.shape_cast %90 : vector<1x1x32x16xf32> to vector<32x16xf32>
    %cst_105 = arith.constant dense<0.000000e+00> : vector<8x16xf32>
    %92 = tpu.matmul %23, %91, %cst_105 {dimension_numbers = #tpu.dot_dimension_numbers<[1], [0], [0], [1], [0, 0, 1, 1], [], []>} : vector<8x32xf32>, vector<32x16xf32>, vector<8x16xf32> -> vector<8x16xf32>
    %cst_106 = arith.constant 2.500000e-01 : f32
    %93 = vector.broadcast %cst_106 : f32 to vector<8x16xf32>
    %94 = arith.mulf %86, %93 : vector<8x16xf32>
    %c0_107 = arith.constant 0 : index
    %c3_108 = arith.constant 3 : index
    %c0_109 = arith.constant 0 : index
    %c0_110 = arith.constant 0 : index
    %95 = vector.load %arg6[%c0_107, %c3_108, %c0_109, %c0_110] : memref<1x4x8x16xf32, #tpu.memory_space<vmem>>, vector<1x1x8x16xf32>
    %96 = vector.shape_cast %95 : vector<1x1x8x16xf32> to vector<8x16xf32>
    %97 = vector.shape_cast %94 : vector<8x16xf32> to vector<1x1x8x16xf32>
    tpu.vector_store %arg6[%c0_107, %c3_108, %c0_109, %c0_110], %97 {strides = array<i32>} : memref<1x4x8x16xf32, #tpu.memory_space<vmem>>, vector<1x1x8x16xf32>,
    %c0_111 = arith.constant 0 : index
    %c3_112 = arith.constant 3 : index
    %c0_113 = arith.constant 0 : index
    %c0_114 = arith.constant 0 : index
    %98 = vector.load %arg7[%c0_111, %c3_112, %c0_113, %c0_114] : memref<1x4x8x16xf32, #tpu.memory_space<vmem>>, vector<1x1x8x16xf32>
    %99 = vector.shape_cast %98 : vector<1x1x8x16xf32> to vector<8x16xf32>
    %100 = vector.shape_cast %89 : vector<8x16xf32> to vector<1x1x8x16xf32>
    tpu.vector_store %arg7[%c0_111, %c3_112, %c0_113, %c0_114], %100 {strides = array<i32>} : memref<1x4x8x16xf32, #tpu.memory_space<vmem>>, vector<1x1x8x16xf32>,
    %c0_115 = arith.constant 0 : index
    %c3_116 = arith.constant 3 : index
    %c0_117 = arith.constant 0 : index
    %c0_118 = arith.constant 0 : index
    %101 = vector.load %arg8[%c0_115, %c3_116, %c0_117, %c0_118] : memref<1x4x8x16xf32, #tpu.memory_space<vmem>>, vector<1x1x8x16xf32>
    %102 = vector.shape_cast %101 : vector<1x1x8x16xf32> to vector<8x16xf32>
    %103 = vector.shape_cast %92 : vector<8x16xf32> to vector<1x1x8x16xf32>
    tpu.vector_store %arg8[%c0_115, %c3_116, %c0_117, %c0_118], %103 {strides = array<i32>} : memref<1x4x8x16xf32, #tpu.memory_space<vmem>>, vector<1x1x8x16xf32>,
    return
  }
  func.func @transform_0(%arg0: i32, %arg1: i32) -> (i32, i32, i32) {
    %c0_i32 = arith.constant 0 : i32
    %c0_i32_0 = arith.constant 0 : i32
    return %arg0, %arg1, %c0_i32 : i32, i32, i32
  }
  func.func @transform_1(%arg0: i32, %arg1: i32) -> (i32, i32) {
    %c0_i32 = arith.constant 0 : i32
    %c0_i32_0 = arith.constant 0 : i32
    %c0_i32_1 = arith.constant 0 : i32
    return %c0_i32, %c0_i32_0 : i32, i32
  }
  func.func @transform_2(%arg0: i32, %arg1: i32) -> (i32, i32) {
    %c0_i32 = arith.constant 0 : i32
    %c0_i32_0 = arith.constant 0 : i32
    %c0_i32_1 = arith.constant 0 : i32
    return %c0_i32, %c0_i32_0 : i32, i32
  }
  func.func @transform_3(%arg0: i32, %arg1: i32) -> (i32, i32, i32, i32) {
    %c0_i32 = arith.constant 0 : i32
    %c0_i32_0 = arith.constant 0 : i32
    %c0_i32_1 = arith.constant 0 : i32
    %c0_i32_2 = arith.constant 0 : i32
    %c0_i32_3 = arith.constant 0 : i32
    return %c0_i32, %c0_i32_0, %c0_i32_1, %c0_i32_2 : i32, i32, i32, i32
  }
  func.func @transform_4(%arg0: i32, %arg1: i32) -> (i32, i32, i32, i32) {
    %c0_i32 = arith.constant 0 : i32
    %c0_i32_0 = arith.constant 0 : i32
    %c0_i32_1 = arith.constant 0 : i32
    return %arg0, %c0_i32, %arg1, %c0_i32_0 : i32, i32, i32, i32
  }
  func.func @transform_5(%arg0: i32, %arg1: i32) -> (i32, i32, i32, i32) {
    %c0_i32 = arith.constant 0 : i32
    %c0_i32_0 = arith.constant 0 : i32
    %c0_i32_1 = arith.constant 0 : i32
    return %arg0, %c0_i32, %arg1, %c0_i32_0 : i32, i32, i32, i32
  }
  func.func @transform_6(%arg0: i32, %arg1: i32) -> (i32, i32, i32, i32) {
    %c0_i32 = arith.constant 0 : i32
    %c0_i32_0 = arith.constant 0 : i32
    %c0_i32_1 = arith.constant 0 : i32
    return %arg0, %c0_i32, %arg1, %c0_i32_0 : i32, i32, i32, i32
  }
}

</mosaic_0001>

<llo_original>
// kernel: tpu_custom_call.1
$region0: #{tpu_custom_call.1}
  #allocation0 [shape = 'u32[]', space=smem, size = 0x4, offset = 0x4, fixed_abs, tag = 'smem constant byte address 0x4 - core index']
  #allocation1 [shape = 'u32[144,128]{1,0:T(1,128)}', space=vmem, size = 0x12000, scoped, tag = 'internal scratch']
  %s0 = inlined_call_operand.vmem [shape: f32[2,8,32], index: 0, kind: input, shape index: {}]
  %s1 = inlined_call_operand.vmem [shape: f32[1,32], index: 1, kind: input, shape index: {}]
  %s2 = inlined_call_operand.vmem [shape: f32[1,32], index: 2, kind: input, shape index: {}]
  %s3 = inlined_call_operand.vmem [shape: f32[3,4,32,16], index: 3, kind: input, shape index: {}]
  %s4 = inlined_call_operand.hbm [shape: f32[2,4,8,16], index: 4, kind: output, shape index: {0}]
  %s5 = inlined_call_operand.hbm [shape: f32[2,4,8,16], index: 5, kind: output, shape index: {1}]
  %s6 = inlined_call_operand.hbm [shape: f32[2,4,8,16], index: 6, kind: output, shape index: {2}]
  %7 = xla_tuple %s4, %s5, %s6
  %s8 = sld [smem:[#allocation0]]
  $region65: #{tpu_custom_call.1} parent=0
    _
  %s10 = ssub.s32 1, %s8
  %s11 = scalar_select 0, %s10, %s8
  $region1: #{tpu_custom_call.1} parent=0
    #allocation2 [shape = 'u8[32768]{0}', space=vmem, size = 0x8000, scoped, tag = 'output window, operand 0']
    #allocation3 [shape = 's32[2]{0}', space=sflag, size = 0x8, scoped, tag = 'scoped memory for tpu_custom_call.1']
    #allocation4 [shape = 'u8[32768]{0}', space=vmem, size = 0x8000, scoped, tag = 'output window, operand 1']
    #allocation5 [shape = 's32[2]{0}', space=sflag, size = 0x8, scoped, tag = 'scoped memory for tpu_custom_call.1']
    #allocation6 [shape = 'u8[32768]{0}', space=vmem, size = 0x8000, scoped, tag = 'output window, operand 2']
    %12 = vsyncpa [#allocation3], 0
    %s13 = scalar_lea.sflag [#allocation3], 1
    %14 = vsyncpa %s13, 0
    %15 = vsyncpa [#allocation5], 0
    %s16 = scalar_lea.sflag [#allocation5], 1
    %17 = vsyncpa %s16, 0
    loop: start=0, step=1, limit=4
    $region2: #{tpu_custom_call.1} parent=1 // loop_pre_header
      _
    $region3: #{tpu_custom_call.1} parent=1 // loop_header
      %s19 = sphi 0, %s23
      %p20 = scmp.ge.s32.totalorder %s19, 4
      %s26 = sphi 0, %s38
      %s27 = sphi 0, %s34
      %s28 = sphi 0, %s26
      %s29 = sphi 0, %s27
      %s30 = sphi 0, %s28
      %s31 = sphi 0, %s29
      %s43 = sphi 0, %s45
      %s46 = sphi 0, %s43
      %s47 = sphi 0, %s46
      %s63 = sphi 0, %s47
      %s67 = sphi 0, %s67
      %s69 = sphi 0, %s67
      %s70 = sphi 0, %s69
      %s84 = sphi 0, %s70
      %s88 = sphi 0, %s88
      %s90 = sphi 0, %s88
      %s91 = sphi 0, %s90
      %s105 = sphi 0, %s91
      %s109 = sphi 0, %s109
      %s111 = sphi 0, %s109
      %s112 = sphi 0, %s111
      %s126 = sphi 0, %s112
      %s134 = sphi 0, %s136
      %s137 = sphi 0, %s134
      %s138 = sphi 0, %s137
      %s154 = sphi 0, %s138
      %s162 = sphi 0, %s164
      %s165 = sphi 0, %s162
      %s166 = sphi 0, %s165
      %s182 = sphi 0, %s166
      %s190 = sphi 0, %s192
      %s193 = sphi 0, %s190
      %s194 = sphi 0, %s193
      %s210 = sphi 0, %s194
    $region4: #{tpu_custom_call.1} parent=1 // loop_header_branch
      %22 = sbr.rel (%p20) target = $region8
    $region5: #{tpu_custom_call.1} parent=1 // loop_body
      %s24 = ssub.s32 %s19, 1
      %s25 = ssub.s32 %s19, 2
      %s32 = sadd.s32 1, %s27
      %p33 = scmp.ge.s32.totalorder %s32, 1
      %s34 = scalar_select %p33, 0, %s32
      %s35 = sadd.s32 1, %s26
      %s36 = scalar_select %p33, %s35, %s26
      %p37 = scmp.ge.s32.totalorder %s36, 2
      %s38 = scalar_select %p37, 0, %s36
      %s39 = ssub.s32 %s26, %s38
      %s40 = ssub.s32 %s27, %s34
      %s41 = sor.u32 %s39, %s40
      %p42 = scmp.eq.s32.totalorder %s41, 0
      %s44 = sadd.s32 %s43, 1
      %s45 = scalar_select %p42, %s43, %s44
      %p48 = pneg %p42
      %p49 = scmp.eq.s32.totalorder %s19, 1
      %p50 = por %p48, %p49
      %p51 = scmp.ne.s32.totalorder %s43, %s46
      %p52 = scmp.eq.s32.totalorder %s19, 0
      %p53 = por %p51, %p52
      %p54 = scmp.ne.s32.totalorder %s43, %s46
      %p55 = scmp.eq.s32.totalorder %s24, 1
      %p56 = por %p54, %p55
      %p57 = scmp.ne.s32.totalorder %s46, %s47
      %p58 = scmp.eq.s32.totalorder %s24, 0
      %p59 = por %p57, %p58
      %p60 = scmp.ne.s32.totalorder %s46, %s47
      %p61 = scmp.eq.s32.totalorder %s25, 1
      %p62 = por %p60, %p61
      %p64 = scmp.ne.s32.totalorder %s47, %s63
      %p65 = scmp.eq.s32.totalorder %s25, 0
      %p66 = por %p64, %p65
      %s68 = sadd.s32 %s67, 1
      %p71 = scmp.eq.s32.totalorder %s19, 1
      %p72 = scmp.ne.s32.totalorder %s67, %s69
      %p73 = scmp.eq.s32.totalorder %s19, 0
      %p74 = por %p72, %p73
      %p75 = scmp.ne.s32.totalorder %s67, %s69
      %p76 = scmp.eq.s32.totalorder %s24, 1
      %p77 = por %p75, %p76
      %p78 = scmp.ne.s32.totalorder %s69, %s70
      %p79 = scmp.eq.s32.totalorder %s24, 0
      %p80 = por %p78, %p79
      %p81 = scmp.ne.s32.totalorder %s69, %s70
      %p82 = scmp.eq.s32.totalorder %s25, 1
      %p83 = por %p81, %p82
      %p85 = scmp.ne.s32.totalorder %s70, %s84
      %p86 = scmp.eq.s32.totalorder %s25, 0
      %p87 = por %p85, %p86
      %s89 = sadd.s32 %s88, 1
      %p92 = scmp.eq.s32.totalorder %s19, 1
      %p93 = scmp.ne.s32.totalorder %s88, %s90
      %p94 = scmp.eq.s32.totalorder %s19, 0
      %p95 = por %p93, %p94
      %p96 = scmp.ne.s32.totalorder %s88, %s90
      %p97 = scmp.eq.s32.totalorder %s24, 1
      %p98 = por %p96, %p97
      %p99 = scmp.ne.s32.totalorder %s90, %s91
      %p100 = scmp.eq.s32.totalorder %s24, 0
      %p101 = por %p99, %p100
      %p102 = scmp.ne.s32.totalorder %s90, %s91
      %p103 = scmp.eq.s32.totalorder %s25, 1
      %p104 = por %p102, %p103
      %p106 = scmp.ne.s32.totalorder %s91, %s105
      %p107 = scmp.eq.s32.totalorder %s25, 0
      %p108 = por %p106, %p107
      %s110 = sadd.s32 %s109, 1
      %p113 = scmp.eq.s32.totalorder %s19, 1
      %p114 = scmp.ne.s32.totalorder %s109, %s111
      %p115 = scmp.eq.s32.totalorder %s19, 0
      %p116 = por %p114, %p115
      %p117 = scmp.ne.s32.totalorder %s109, %s111
      %p118 = scmp.eq.s32.totalorder %s24, 1
      %p119 = por %p117, %p118
      %p120 = scmp.ne.s32.totalorder %s111, %s112
      %p121 = scmp.eq.s32.totalorder %s24, 0
      %p122 = por %p120, %p121
      %p123 = scmp.ne.s32.totalorder %s111, %s112
      %p124 = scmp.eq.s32.totalorder %s25, 1
      %p125 = por %p123, %p124
      %p127 = scmp.ne.s32.totalorder %s112, %s126
      %p128 = scmp.eq.s32.totalorder %s25, 0
      %p129 = por %p127, %p128
      %s130 = ssub.s32 %s26, %s38
      %s131 = ssub.s32 %s27, %s34
      %s132 = sor.u32 %s130, %s131
      %p133 = scmp.eq.s32.totalorder %s132, 0
      %s135 = sadd.s32 %s134, 1
      %s136 = scalar_select %p133, %s134, %s135
      %p139 = pneg %p133
      %p140 = scmp.eq.s32.totalorder %s19, 1
      %p141 = por %p139, %p140
      %p142 = scmp.ne.s32.totalorder %s134, %s137
      %p143 = scmp.eq.s32.totalorder %s19, 0
      %p144 = por %p142, %p143
      %p145 = scmp.ne.s32.totalorder %s134, %s137
      %p146 = scmp.eq.s32.totalorder %s24, 1
      %p147 = por %p145, %p146
      %p148 = scmp.ne.s32.totalorder %s137, %s138
      %p149 = scmp.eq.s32.totalorder %s24, 0
      %p150 = por %p148, %p149
      %p151 = scmp.ne.s32.totalorder %s137, %s138
      %p152 = scmp.eq.s32.totalorder %s25, 1
      %p153 = por %p151, %p152
      %p155 = scmp.ne.s32.totalorder %s138, %s154
      %p156 = scmp.eq.s32.totalorder %s25, 0
      %p157 = por %p155, %p156
      %s158 = ssub.s32 %s26, %s38
      %s159 = ssub.s32 %s27, %s34
      %s160 = sor.u32 %s158, %s159
      %p161 = scmp.eq.s32.totalorder %s160, 0
      %s163 = sadd.s32 %s162, 1
      %s164 = scalar_select %p161, %s162, %s163
      %p167 = pneg %p161
      %p168 = scmp.eq.s32.totalorder %s19, 1
      %p169 = por %p167, %p168
      %p170 = scmp.ne.s32.totalorder %s162, %s165
      %p171 = scmp.eq.s32.totalorder %s19, 0
      %p172 = por %p170, %p171
      %p173 = scmp.ne.s32.totalorder %s162, %s165
      %p174 = scmp.eq.s32.totalorder %s24, 1
      %p175 = por %p173, %p174
      %p176 = scmp.ne.s32.totalorder %s165, %s166
      %p177 = scmp.eq.s32.totalorder %s24, 0
      %p178 = por %p176, %p177
      %p179 = scmp.ne.s32.totalorder %s165, %s166
      %p180 = scmp.eq.s32.totalorder %s25, 1
      %p181 = por %p179, %p180
      %p183 = scmp.ne.s32.totalorder %s166, %s182
      %p184 = scmp.eq.s32.totalorder %s25, 0
      %p185 = por %p183, %p184
      %s186 = ssub.s32 %s26, %s38
      %s187 = ssub.s32 %s27, %s34
      %s188 = sor.u32 %s186, %s187
      %p189 = scmp.eq.s32.totalorder %s188, 0
      %s191 = sadd.s32 %s190, 1
      %s192 = scalar_select %p189, %s190, %s191
      %p195 = pneg %p189
      %p196 = scmp.eq.s32.totalorder %s19, 1
      %p197 = por %p195, %p196
      %p198 = scmp.ne.s32.totalorder %s190, %s193
      %p199 = scmp.eq.s32.totalorder %s19, 0
      %p200 = por %p198, %p199
      %p201 = scmp.ne.s32.totalorder %s190, %s193
      %p202 = scmp.eq.s32.totalorder %s24, 1
      %p203 = por %p201, %p202
      %p204 = scmp.ne.s32.totalorder %s193, %s194
      %p205 = scmp.eq.s32.totalorder %s24, 0
      %p206 = por %p204, %p205
      %p207 = scmp.ne.s32.totalorder %s193, %s194
      %p208 = scmp.eq.s32.totalorder %s25, 1
      %p209 = por %p207, %p208
      %p211 = scmp.ne.s32.totalorder %s194, %s210
      %p212 = scmp.eq.s32.totalorder %s25, 0
      %p213 = por %p211, %p212
      %p214 = scmp.le.s32.totalorder 1, %s19
      %p215 = scmp.lt.s32.totalorder %s19, 3
      %p216 = pnand %p214, %p215
      %p217 = pneg %p216
      // Predicated region
      $region9: #{tpu_custom_call.1} parent=5 // pred_check
        _
      $region10: #{tpu_custom_call.1} parent=5 // pred_check_branch
        %219 = sbr.rel (%p216) target = $region12
      $region11: #{tpu_custom_call.1} parent=5 // pred_region
        %s220 = ssub.s32 %s19, 1
        // Predicated region
        $region13: #{tpu_custom_call.1} parent=11 // pred_check
          %p221 = pneg %p80
        $region14: #{tpu_custom_call.1} parent=11 // pred_check_branch
          %223 = sbr.rel (%p221) target = $region16
        $region15: #{tpu_custom_call.1} parent=11 // pred_region
          _
        $region16: #{tpu_custom_call.1} parent=11 // pred_fallthru
          _
        // Predicated region
        $region17: #{tpu_custom_call.1} parent=11 // pred_check
          %p224 = pneg %p101
        $region18: #{tpu_custom_call.1} parent=11 // pred_check_branch
          %226 = sbr.rel (%p224) target = $region20
        $region19: #{tpu_custom_call.1} parent=11 // pred_region
          _
        $region20: #{tpu_custom_call.1} parent=11 // pred_fallthru
          _
        // Predicated region
        $region21: #{tpu_custom_call.1} parent=11 // pred_check
          %p227 = pneg %p122
        $region22: #{tpu_custom_call.1} parent=11 // pred_check_branch
          %229 = sbr.rel (%p227) target = $region24
        $region23: #{tpu_custom_call.1} parent=11 // pred_region
          _
        $region24: #{tpu_custom_call.1} parent=11 // pred_fallthru
          _
      $region12: #{tpu_custom_call.1} parent=5 // pred_fallthru
        _
      %p230 = scmp.lt.s32.totalorder %s19, 2
      // Predicated region
      $region25: #{tpu_custom_call.1} parent=5 // pred_check
        %p231 = pneg %p230
      $region26: #{tpu_custom_call.1} parent=5 // pred_check_branch
        %233 = sbr.rel (%p231) target = $region28
      $region27: #{tpu_custom_call.1} parent=5 // pred_region
        // Predicated region
        $region29: #{tpu_custom_call.1} parent=27 // pred_check
          %p234 = pneg %p53
        $region30: #{tpu_custom_call.1} parent=27 // pred_check_branch
          %236 = sbr.rel (%p234) target = $region32
        $region31: #{tpu_custom_call.1} parent=27 // pred_region
          %p237 = scmp.lt.s32.totalorder %s26, 1
          %s238 = scalar_select %p237, %s26, 1
          %p239 = scmp.lt.s32.totalorder %s27, 0
          %s240 = scalar_select %p239, %s27, 0
          %s241 = sadd.s32 %s240, %s238
          %s242 = smul.addr %s241, 8
          %s243 = scalar_lea.vmem %s0, %s242
        $region32: #{tpu_custom_call.1} parent=27 // pred_fallthru
          _
      $region28: #{tpu_custom_call.1} parent=5 // pred_fallthru
        _
      %p244 = scmp.le.s32.totalorder 1, %s19
      %p245 = scmp.lt.s32.totalorder %s19, 3
      %p246 = pnand %p244, %p245
      %p247 = pneg %p246
      // Predicated region
      $region33: #{tpu_custom_call.1} parent=5 // pred_check
        _
      $region34: #{tpu_custom_call.1} parent=5 // pred_check_branch
        %249 = sbr.rel (%p246) target = $region36
      $region35: #{tpu_custom_call.1} parent=5 // pred_region
        %s250 = ssub.s32 %s19, 1
        %p251 = scmp.lt.s32.totalorder %s28, 1
        %s252 = scalar_select %p251, %s28, 1
        %p253 = scmp.lt.s32.totalorder %s29, 0
        %s254 = scalar_select %p253, %s29, 0
        %s255 = sadd.s32 %s254, %s252
        %s256 = smul.addr %s255, 8
        %s257 = scalar_lea.vmem %s0, %s256
        %p258 = pneg %p59
        %p259 = pneg %p56
        %p260 = pneg %p80
        %p261 = pneg %p77
        %p262 = pneg %p101
        %p263 = pneg %p98
        %p264 = pneg %p122
        %p265 = pneg %p119
        %p266 = pneg %p150
        %p267 = pneg %p147
        %s268 = sand.u32 %s137, 1
        %s269 = scalar_lea.sflag [#allocation3], %s268
        %s270 = sand.u32 %s137, 1
        %s271 = smul.addr %s270, 32
        %s272 = scalar_lea.vmem [#allocation2], %s271
        %p273 = pneg %p178
        %p274 = pneg %p175
        %s275 = sand.u32 %s24, 1
        %s276 = scalar_lea.sflag [#allocation5], %s275
        %s277 = sand.u32 %s165, 1
        %s278 = smul.addr %s277, 32
        %s279 = scalar_lea.vmem [#allocation4], %s278
        %p280 = pneg %p206
        %p281 = pneg %p203
        %s282 = sand.u32 %s24, 1
        %s283 = scalar_lea.sflag [#allocation5], %s282
        %s284 = sand.u32 %s193, 1
        %s285 = smul.addr %s284, 32
        %s286 = scalar_lea.vmem [#allocation6], %s285
        %p287 = scmp.lt.s32.totalorder %s28, 1
        %s288 = scalar_select %p287, %s28, 1
        %p289 = scmp.lt.s32.totalorder %s29, 0
        %s290 = scalar_select %p289, %s29, 0
        %s291 = sadd.s32 %s290, %s288
        %s292 = smul.addr %s291, 8
        %s293 = scalar_lea.vmem %s0, %s292
        %v294 = vld [vmem:[%s293] sm:$0xff]
        %vm295 = vcmask 261120
        %v296 = vsel %vm295, %v294, 0.0
        %297 = vadd.xlane.f32.xlu0 %v296
        %v298 = vpop.xlane.xlu0 %297
        %v299 = vrcp.pop 32.0
        %v300 = vmul.f32 %v298, %v299
        %v301 = vsub.f32 %v294, %v300
        %v302 = vmul.f32 %v301, %v301
        %v303 = vsel %vm295, %v302, 0.0
        %304 = vadd.xlane.f32.xlu0 %v303
        %v305 = vpop.xlane.xlu0 %304
        %v306 = vmul.f32 %v305, %v299
        %v307 = vadd.f32 %v306, 1e-05
        %v308 = vrsqrt.pop %v307
        %v309 = vmul.f32 %v301, %v308
        %v310 = vld [vmem:[%s1] sm:$0x1]
        %v312 = vlaneseq
        %v313 = vshrl.u32 %v312, 7
        %v314 = vsub.s32 0, %v313
        %v315 = vrot.slane %v310, %v314
        %v317 = vmul.f32 %v309, %v315
        %v318 = vld [vmem:[%s2] sm:$0x1]
        %v320 = vlaneseq
        %v321 = vshrl.u32 %v320, 7
        %v322 = vsub.s32 0, %v321
        %v323 = vrot.slane %v318, %v322
        %v325 = vadd.f32 %v317, %v323
        %v326 = vld [vmem:[%s3] sm:$0xff]
        %v327 = vld [vmem:[%s3 + $0x8] sm:$0xff]
        %v328 = vld [vmem:[%s3 + $0x10] sm:$0xff]
        %v329 = vld [vmem:[%s3 + $0x18] sm:$0xff]
        %v331 = vsel %vm295, %v325, 0
        %333 = vmatprep.subr.mxu0 0.0
        %334 = vmatpush1.msra.mxu0 0.0
        %335 = vmatprep.subr.mxu0 0.0
        %336 = vmatpush1.msra.mxu0 0.0
        %337 = vmatprep.subr.mxu0 0.0
        %338 = vmatpush1.msra.mxu0 0.0
        %339 = vmatprep.subr.mxu0 0.0
        %340 = vmatpush1.msra.mxu0 0.0
        %341 = vmatprep.subr.mxu0 0.0
        %342 = vmatpush1.msra.mxu0 0.0
        %343 = vmatprep.subr.mxu0 0.0
        %344 = vmatpush1.msra.mxu0 0.0
        %345 = vmatprep.subr.mxu0 0.0
        %346 = vmatpush1.msra.mxu0 0.0
        %347 = vmatprep.subr.mxu0 0.0
        %348 = vmatpush1.msra.mxu0 0.0
        %349 = vmatprep.subr.mxu0 0.0
        %350 = vmatpush1.msra.mxu0 0.0
        %351 = vmatprep.subr.mxu0 0.0
        %352 = vmatpush1.msra.mxu0 0.0
        %353 = vmatprep.subr.mxu0 0.0
        %354 = vmatpush1.msra.mxu0 0.0
        %355 = vmatprep.subr.mxu0 0.0
        %356 = vmatpush1.msra.mxu0 0.0
        %357 = vmatprep.subr.mxu0 0.0
        %358 = vmatpush1.msra.mxu0 %v329
        %359 = vmatprep.subr.mxu0 0.0
        %360 = vmatpush1.msra.mxu0 %v328
        %361 = vmatprep.subr.mxu0 0.0
        %362 = vmatpush1.msra.mxu0 %v327
        %363 = vmatprep.subr.mxu0 0.0
        %364 = vmatpush1.msra.mxu0 %v326
        %365 = vmatprep.subr.mxu0 0.0
        %366 = vmatpush2.msra.mxu0 0.0
        %367 = vmatprep.subr.mxu0 0.0
        %368 = vmatpush2.msra.mxu0 0.0
        %369 = vmatprep.subr.mxu0 0.0
        %370 = vmatpush2.msra.mxu0 0.0
        %371 = vmatprep.subr.mxu0 0.0
        %372 = vmatpush2.msra.mxu0 0.0
        %373 = vmatprep.subr.mxu0 0.0
        %374 = vmatpush2.msra.mxu0 0.0
        %375 = vmatprep.subr.mxu0 0.0
        %376 = vmatpush2.msra.mxu0 0.0
        %377 = vmatprep.subr.mxu0 0.0
        %378 = vmatpush2.msra.mxu0 0.0
        %379 = vmatprep.subr.mxu0 0.0
        %380 = vmatpush2.msra.mxu0 0.0
        %381 = vmatprep.subr.mxu0 0.0
        %382 = vmatpush2.msra.mxu0 0.0
        %383 = vmatprep.subr.mxu0 0.0
        %384 = vmatpush2.msra.mxu0 0.0
        %385 = vmatprep.subr.mxu0 0.0
        %386 = vmatpush2.msra.mxu0 0.0
        %387 = vmatprep.subr.mxu0 0.0
        %388 = vmatpush2.msra.mxu0 0.0
        %389 = vmatprep.subr.mxu0 0.0
        %390 = vmatpush2.msra.mxu0 0.0
        %391 = vmatprep.subr.mxu0 0.0
        %392 = vmatpush2.msra.mxu0 0.0
        %393 = vmatprep.subr.mxu0 0.0
        %394 = vmatpush2.msra.mxu0 0.0
        %395 = vmatprep.subr.mxu0 0.0
        %396 = vmatpush2.msra.mxu0 0.0
        %397 = vmatprep.mubr.f32.mxu0 0.0
        %398 = vmatmul.mubr.f32.gmra.mxu0 %v331
        %v399 = vpop.f32.mrf.mxu0
        %v400 = vadd.f32 0.0, %v399
        %v401 = vpop.f32.mrf.mxu0
        %402 = vdwg.mxu0
        %s403 = scalar_lea.vmem %s3, 128
        %v404 = vld [vmem:[%s403] sm:$0xff]
        %v405 = vld [vmem:[%s403 + $0x8] sm:$0xff]
        %v406 = vld [vmem:[%s403 + $0x10] sm:$0xff]
        %v407 = vld [vmem:[%s403 + $0x18] sm:$0xff]
        %408 = vmatprep.subr.mxu0 0.0
        %409 = vmatpush1.msra.mxu0 0.0
        %410 = vmatprep.subr.mxu0 0.0
        %411 = vmatpush1.msra.mxu0 0.0
        %412 = vmatprep.subr.mxu0 0.0
        %413 = vmatpush1.msra.mxu0 0.0
        %414 = vmatprep.subr.mxu0 0.0
        %415 = vmatpush1.msra.mxu0 0.0
        %416 = vmatprep.subr.mxu0 0.0
        %417 = vmatpush1.msra.mxu0 0.0
        %418 = vmatprep.subr.mxu0 0.0
        %419 = vmatpush1.msra.mxu0 0.0
        %420 = vmatprep.subr.mxu0 0.0
        %421 = vmatpush1.msra.mxu0 0.0
        %422 = vmatprep.subr.mxu0 0.0
        %423 = vmatpush1.msra.mxu0 0.0
        %424 = vmatprep.subr.mxu0 0.0
        %425 = vmatpush1.msra.mxu0 0.0
        %426 = vmatprep.subr.mxu0 0.0
        %427 = vmatpush1.msra.mxu0 0.0
        %428 = vmatprep.subr.mxu0 0.0
        %429 = vmatpush1.msra.mxu0 0.0
        %430 = vmatprep.subr.mxu0 0.0
        %431 = vmatpush1.msra.mxu0 0.0
        %432 = vmatprep.subr.mxu0 0.0
        %433 = vmatpush1.msra.mxu0 %v407
        %434 = vmatprep.subr.mxu0 0.0
        %435 = vmatpush1.msra.mxu0 %v406
        %436 = vmatprep.subr.mxu0 0.0
        %437 = vmatpush1.msra.mxu0 %v405
        %438 = vmatprep.subr.mxu0 0.0
        %439 = vmatpush1.msra.mxu0 %v404
        %440 = vmatprep.subr.mxu0 0.0
        %441 = vmatpush2.msra.mxu0 0.0
        %442 = vmatprep.subr.mxu0 0.0
        %443 = vmatpush2.msra.mxu0 0.0
        %444 = vmatprep.subr.mxu0 0.0
        %445 = vmatpush2.msra.mxu0 0.0
        %446 = vmatprep.subr.mxu0 0.0
        %447 = vmatpush2.msra.mxu0 0.0
        %448 = vmatprep.subr.mxu0 0.0
        %449 = vmatpush2.msra.mxu0 0.0
        %450 = vmatprep.subr.mxu0 0.0
        %451 = vmatpush2.msra.mxu0 0.0
        %452 = vmatprep.subr.mxu0 0.0
        %453 = vmatpush2.msra.mxu0 0.0
        %454 = vmatprep.subr.mxu0 0.0
        %455 = vmatpush2.msra.mxu0 0.0
        %456 = vmatprep.subr.mxu0 0.0
        %457 = vmatpush2.msra.mxu0 0.0
        %458 = vmatprep.subr.mxu0 0.0
        %459 = vmatpush2.msra.mxu0 0.0
        %460 = vmatprep.subr.mxu0 0.0
        %461 = vmatpush2.msra.mxu0 0.0
        %462 = vmatprep.subr.mxu0 0.0
        %463 = vmatpush2.msra.mxu0 0.0
        %464 = vmatprep.subr.mxu0 0.0
        %465 = vmatpush2.msra.mxu0 0.0
        %466 = vmatprep.subr.mxu0 0.0
        %467 = vmatpush2.msra.mxu0 0.0
        %468 = vmatprep.subr.mxu0 0.0
        %469 = vmatpush2.msra.mxu0 0.0
        %470 = vmatprep.subr.mxu0 0.0
        %471 = vmatpush2.msra.mxu0 0.0
        %472 = vmatprep.mubr.f32.mxu0 0.0
        %473 = vmatmul.mubr.f32.gmra.mxu0 %v331
        %v474 = vpop.f32.mrf.mxu0
        %v475 = vadd.f32 0.0, %v474
        %v476 = vpop.f32.mrf.mxu0
        %477 = vdwg.mxu0
        %s478 = scalar_lea.vmem %s3, 256
        %v479 = vld [vmem:[%s478] sm:$0xff]
        %v480 = vld [vmem:[%s478 + $0x8] sm:$0xff]
        %v481 = vld [vmem:[%s478 + $0x10] sm:$0xff]
        %v482 = vld [vmem:[%s478 + $0x18] sm:$0xff]
        %483 = vmatprep.subr.mxu0 0.0
        %484 = vmatpush1.msra.mxu0 0.0
        %485 = vmatprep.subr.mxu0 0.0
        %486 = vmatpush1.msra.mxu0 0.0
        %487 = vmatprep.subr.mxu0 0.0
        %488 = vmatpush1.msra.mxu0 0.0
        %489 = vmatprep.subr.mxu0 0.0
        %490 = vmatpush1.msra.mxu0 0.0
        %491 = vmatprep.subr.mxu0 0.0
        %492 = vmatpush1.msra.mxu0 0.0
        %493 = vmatprep.subr.mxu0 0.0
        %494 = vmatpush1.msra.mxu0 0.0
        %495 = vmatprep.subr.mxu0 0.0
        %496 = vmatpush1.msra.mxu0 0.0
        %497 = vmatprep.subr.mxu0 0.0
        %498 = vmatpush1.msra.mxu0 0.0
        %499 = vmatprep.subr.mxu0 0.0
        %500 = vmatpush1.msra.mxu0 0.0
        %501 = vmatprep.subr.mxu0 0.0
        %502 = vmatpush1.msra.mxu0 0.0
        %503 = vmatprep.subr.mxu0 0.0
        %504 = vmatpush1.msra.mxu0 0.0
        %505 = vmatprep.subr.mxu0 0.0
        %506 = vmatpush1.msra.mxu0 0.0
        %507 = vmatprep.subr.mxu0 0.0
        %508 = vmatpush1.msra.mxu0 %v482
        %509 = vmatprep.subr.mxu0 0.0
        %510 = vmatpush1.msra.mxu0 %v481
        %511 = vmatprep.subr.mxu0 0.0
        %512 = vmatpush1.msra.mxu0 %v480
        %513 = vmatprep.subr.mxu0 0.0
        %514 = vmatpush1.msra.mxu0 %v479
        %515 = vmatprep.subr.mxu0 0.0
        %516 = vmatpush2.msra.mxu0 0.0
        %517 = vmatprep.subr.mxu0 0.0
        %518 = vmatpush2.msra.mxu0 0.0
        %519 = vmatprep.subr.mxu0 0.0
        %520 = vmatpush2.msra.mxu0 0.0
        %521 = vmatprep.subr.mxu0 0.0
        %522 = vmatpush2.msra.mxu0 0.0
        %523 = vmatprep.subr.mxu0 0.0
        %524 = vmatpush2.msra.mxu0 0.0
        %525 = vmatprep.subr.mxu0 0.0
        %526 = vmatpush2.msra.mxu0 0.0
        %527 = vmatprep.subr.mxu0 0.0
        %528 = vmatpush2.msra.mxu0 0.0
        %529 = vmatprep.subr.mxu0 0.0
        %530 = vmatpush2.msra.mxu0 0.0
        %531 = vmatprep.subr.mxu0 0.0
        %532 = vmatpush2.msra.mxu0 0.0
        %533 = vmatprep.subr.mxu0 0.0
        %534 = vmatpush2.msra.mxu0 0.0
        %535 = vmatprep.subr.mxu0 0.0
        %536 = vmatpush2.msra.mxu0 0.0
        %537 = vmatprep.subr.mxu0 0.0
        %538 = vmatpush2.msra.mxu0 0.0
        %539 = vmatprep.subr.mxu0 0.0
        %540 = vmatpush2.msra.mxu0 0.0
        %541 = vmatprep.subr.mxu0 0.0
        %542 = vmatpush2.msra.mxu0 0.0
        %543 = vmatprep.subr.mxu0 0.0
        %544 = vmatpush2.msra.mxu0 0.0
        %545 = vmatprep.subr.mxu0 0.0
        %546 = vmatpush2.msra.mxu0 0.0
        %547 = vmatprep.mubr.f32.mxu0 0.0
        %548 = vmatmul.mubr.f32.gmra.mxu0 %v331
        %v549 = vpop.f32.mrf.mxu0
        %v550 = vadd.f32 0.0, %v549
        %v551 = vpop.f32.mrf.mxu0
        %552 = vdwg.mxu0
        %v553 = vmul.f32 %v400, 0.25
        %vm554 = vcmask 130048
        %555 = vst.msk [vmem:[%s272] sm:$0xff] %vm554, %v553
        %556 = vst.msk [vmem:[%s279] sm:$0xff] %vm554, %v475
        %557 = vst.msk [vmem:[%s286] sm:$0xff] %vm554, %v550
        %s558 = scalar_lea.vmem %s3, 32
        %v559 = vld [vmem:[%s558] sm:$0xff]
        %v560 = vld [vmem:[%s558 + $0x8] sm:$0xff]
        %v561 = vld [vmem:[%s558 + $0x10] sm:$0xff]
        %v562 = vld [vmem:[%s558 + $0x18] sm:$0xff]
        %563 = vmatprep.subr.mxu0 0.0
        %564 = vmatpush1.msra.mxu0 0.0
        %565 = vmatprep.subr.mxu0 0.0
        %566 = vmatpush1.msra.mxu0 0.0
        %567 = vmatprep.subr.mxu0 0.0
        %568 = vmatpush1.msra.mxu0 0.0
        %569 = vmatprep.subr.mxu0 0.0
        %570 = vmatpush1.msra.mxu0 0.0
        %571 = vmatprep.subr.mxu0 0.0
        %572 = vmatpush1.msra.mxu0 0.0
        %573 = vmatprep.subr.mxu0 0.0
        %574 = vmatpush1.msra.mxu0 0.0
        %575 = vmatprep.subr.mxu0 0.0
        %576 = vmatpush1.msra.mxu0 0.0
        %577 = vmatprep.subr.mxu0 0.0
        %578 = vmatpush1.msra.mxu0 0.0
        %579 = vmatprep.subr.mxu0 0.0
        %580 = vmatpush1.msra.mxu0 0.0
        %581 = vmatprep.subr.mxu0 0.0
        %582 = vmatpush1.msra.mxu0 0.0
        %583 = vmatprep.subr.mxu0 0.0
        %584 = vmatpush1.msra.mxu0 0.0
        %585 = vmatprep.subr.mxu0 0.0
        %586 = vmatpush1.msra.mxu0 0.0
        %587 = vmatprep.subr.mxu0 0.0
        %588 = vmatpush1.msra.mxu0 %v562
        %589 = vmatprep.subr.mxu0 0.0
        %590 = vmatpush1.msra.mxu0 %v561
        %591 = vmatprep.subr.mxu0 0.0
        %592 = vmatpush1.msra.mxu0 %v560
        %593 = vmatprep.subr.mxu0 0.0
        %594 = vmatpush1.msra.mxu0 %v559
        %595 = vmatprep.subr.mxu0 0.0
        %596 = vmatpush2.msra.mxu0 0.0
        %597 = vmatprep.subr.mxu0 0.0
        %598 = vmatpush2.msra.mxu0 0.0
        %599 = vmatprep.subr.mxu0 0.0
        %600 = vmatpush2.msra.mxu0 0.0
        %601 = vmatprep.subr.mxu0 0.0
        %602 = vmatpush2.msra.mxu0 0.0
        %603 = vmatprep.subr.mxu0 0.0
        %604 = vmatpush2.msra.mxu0 0.0
        %605 = vmatprep.subr.mxu0 0.0
        %606 = vmatpush2.msra.mxu0 0.0
        %607 = vmatprep.subr.mxu0 0.0
        %608 = vmatpush2.msra.mxu0 0.0
        %609 = vmatprep.subr.mxu0 0.0
        %610 = vmatpush2.msra.mxu0 0.0
        %611 = vmatprep.subr.mxu0 0.0
        %612 = vmatpush2.msra.mxu0 0.0
        %613 = vmatprep.subr.mxu0 0.0
        %614 = vmatpush2.msra.mxu0 0.0
        %615 = vmatprep.subr.mxu0 0.0
        %616 = vmatpush2.msra.mxu0 0.0
        %617 = vmatprep.subr.mxu0 0.0
        %618 = vmatpush2.msra.mxu0 0.0
        %619 = vmatprep.subr.mxu0 0.0
        %620 = vmatpush2.msra.mxu0 0.0
        %621 = vmatprep.subr.mxu0 0.0
        %622 = vmatpush2.msra.mxu0 0.0
        %623 = vmatprep.subr.mxu0 0.0
        %624 = vmatpush2.msra.mxu0 0.0
        %625 = vmatprep.subr.mxu0 0.0
        %626 = vmatpush2.msra.mxu0 0.0
        %627 = vmatprep.mubr.f32.mxu0 0.0
        %628 = vmatmul.mubr.f32.gmra.mxu0 %v331
        %v629 = vpop.f32.mrf.mxu0
        %v630 = vadd.f32 0.0, %v629
        %v631 = vpop.f32.mrf.mxu0
        %632 = vdwg.mxu0
        %s633 = scalar_lea.vmem %s3, 160
        %v634 = vld [vmem:[%s633] sm:$0xff]
        %v635 = vld [vmem:[%s633 + $0x8] sm:$0xff]
        %v636 = vld [vmem:[%s633 + $0x10] sm:$0xff]
        %v637 = vld [vmem:[%s633 + $0x18] sm:$0xff]
        %638 = vmatprep.subr.mxu0 0.0
        %639 = vmatpush1.msra.mxu0 0.0
        %640 = vmatprep.subr.mxu0 0.0
        %641 = vmatpush1.msra.mxu0 0.0
        %642 = vmatprep.subr.mxu0 0.0
        %643 = vmatpush1.msra.mxu0 0.0
        %644 = vmatprep.subr.mxu0 0.0
        %645 = vmatpush1.msra.mxu0 0.0
        %646 = vmatprep.subr.mxu0 0.0
        %647 = vmatpush1.msra.mxu0 0.0
        %648 = vmatprep.subr.mxu0 0.0
        %649 = vmatpush1.msra.mxu0 0.0
        %650 = vmatprep.subr.mxu0 0.0
        %651 = vmatpush1.msra.mxu0 0.0
        %652 = vmatprep.subr.mxu0 0.0
        %653 = vmatpush1.msra.mxu0 0.0
        %654 = vmatprep.subr.mxu0 0.0
        %655 = vmatpush1.msra.mxu0 0.0
        %656 = vmatprep.subr.mxu0 0.0
        %657 = vmatpush1.msra.mxu0 0.0
        %658 = vmatprep.subr.mxu0 0.0
        %659 = vmatpush1.msra.mxu0 0.0
        %660 = vmatprep.subr.mxu0 0.0
        %661 = vmatpush1.msra.mxu0 0.0
        %662 = vmatprep.subr.mxu0 0.0
        %663 = vmatpush1.msra.mxu0 %v637
        %664 = vmatprep.subr.mxu0 0.0
        %665 = vmatpush1.msra.mxu0 %v636
        %666 = vmatprep.subr.mxu0 0.0
        %667 = vmatpush1.msra.mxu0 %v635
        %668 = vmatprep.subr.mxu0 0.0
        %669 = vmatpush1.msra.mxu0 %v634
        %670 = vmatprep.subr.mxu0 0.0
        %671 = vmatpush2.msra.mxu0 0.0
        %672 = vmatprep.subr.mxu0 0.0
        %673 = vmatpush2.msra.mxu0 0.0
        %674 = vmatprep.subr.mxu0 0.0
        %675 = vmatpush2.msra.mxu0 0.0
        %676 = vmatprep.subr.mxu0 0.0
        %677 = vmatpush2.msra.mxu0 0.0
        %678 = vmatprep.subr.mxu0 0.0
        %679 = vmatpush2.msra.mxu0 0.0
        %680 = vmatprep.subr.mxu0 0.0
        %681 = vmatpush2.msra.mxu0 0.0
        %682 = vmatprep.subr.mxu0 0.0
        %683 = vmatpush2.msra.mxu0 0.0
        %684 = vmatprep.subr.mxu0 0.0
        %685 = vmatpush2.msra.mxu0 0.0
        %686 = vmatprep.subr.mxu0 0.0
        %687 = vmatpush2.msra.mxu0 0.0
        %688 = vmatprep.subr.mxu0 0.0
        %689 = vmatpush2.msra.mxu0 0.0
        %690 = vmatprep.subr.mxu0 0.0
        %691 = vmatpush2.msra.mxu0 0.0
        %692 = vmatprep.subr.mxu0 0.0
        %693 = vmatpush2.msra.mxu0 0.0
        %694 = vmatprep.subr.mxu0 0.0
        %695 = vmatpush2.msra.mxu0 0.0
        %696 = vmatprep.subr.mxu0 0.0
        %697 = vmatpush2.msra.mxu0 0.0
        %698 = vmatprep.subr.mxu0 0.0
        %699 = vmatpush2.msra.mxu0 0.0
        %700 = vmatprep.subr.mxu0 0.0
        %701 = vmatpush2.msra.mxu0 0.0
        %702 = vmatprep.mubr.f32.mxu0 0.0
        %703 = vmatmul.mubr.f32.gmra.mxu0 %v331
        %v704 = vpop.f32.mrf.mxu0
        %v705 = vadd.f32 0.0, %v704
        %v706 = vpop.f32.mrf.mxu0
        %707 = vdwg.mxu0
        %s708 = scalar_lea.vmem %s3, 288
        %v709 = vld [vmem:[%s708] sm:$0xff]
        %v710 = vld [vmem:[%s708 + $0x8] sm:$0xff]
        %v711 = vld [vmem:[%s708 + $0x10] sm:$0xff]
        %v712 = vld [vmem:[%s708 + $0x18] sm:$0xff]
        %713 = vmatprep.subr.mxu0 0.0
        %714 = vmatpush1.msra.mxu0 0.0
        %715 = vmatprep.subr.mxu0 0.0
        %716 = vmatpush1.msra.mxu0 0.0
        %717 = vmatprep.subr.mxu0 0.0
        %718 = vmatpush1.msra.mxu0 0.0
        %719 = vmatprep.subr.mxu0 0.0
        %720 = vmatpush1.msra.mxu0 0.0
        %721 = vmatprep.subr.mxu0 0.0
        %722 = vmatpush1.msra.mxu0 0.0
        %723 = vmatprep.subr.mxu0 0.0
        %724 = vmatpush1.msra.mxu0 0.0
        %725 = vmatprep.subr.mxu0 0.0
        %726 = vmatpush1.msra.mxu0 0.0
        %727 = vmatprep.subr.mxu0 0.0
        %728 = vmatpush1.msra.mxu0 0.0
        %729 = vmatprep.subr.mxu0 0.0
        %730 = vmatpush1.msra.mxu0 0.0
        %731 = vmatprep.subr.mxu0 0.0
        %732 = vmatpush1.msra.mxu0 0.0
        %733 = vmatprep.subr.mxu0 0.0
        %734 = vmatpush1.msra.mxu0 0.0
        %735 = vmatprep.subr.mxu0 0.0
        %736 = vmatpush1.msra.mxu0 0.0
        %737 = vmatprep.subr.mxu0 0.0
        %738 = vmatpush1.msra.mxu0 %v712
        %739 = vmatprep.subr.mxu0 0.0
        %740 = vmatpush1.msra.mxu0 %v711
        %741 = vmatprep.subr.mxu0 0.0
        %742 = vmatpush1.msra.mxu0 %v710
        %743 = vmatprep.subr.mxu0 0.0
        %744 = vmatpush1.msra.mxu0 %v709
        %745 = vmatprep.subr.mxu0 0.0
        %746 = vmatpush2.msra.mxu0 0.0
        %747 = vmatprep.subr.mxu0 0.0
        %748 = vmatpush2.msra.mxu0 0.0
        %749 = vmatprep.subr.mxu0 0.0
        %750 = vmatpush2.msra.mxu0 0.0
        %751 = vmatprep.subr.mxu0 0.0
        %752 = vmatpush2.msra.mxu0 0.0
        %753 = vmatprep.subr.mxu0 0.0
        %754 = vmatpush2.msra.mxu0 0.0
        %755 = vmatprep.subr.mxu0 0.0
        %756 = vmatpush2.msra.mxu0 0.0
        %757 = vmatprep.subr.mxu0 0.0
        %758 = vmatpush2.msra.mxu0 0.0
        %759 = vmatprep.subr.mxu0 0.0
        %760 = vmatpush2.msra.mxu0 0.0
        %761 = vmatprep.subr.mxu0 0.0
        %762 = vmatpush2.msra.mxu0 0.0
        %763 = vmatprep.subr.mxu0 0.0
        %764 = vmatpush2.msra.mxu0 0.0
        %765 = vmatprep.subr.mxu0 0.0
        %766 = vmatpush2.msra.mxu0 0.0
        %767 = vmatprep.subr.mxu0 0.0
        %768 = vmatpush2.msra.mxu0 0.0
        %769 = vmatprep.subr.mxu0 0.0
        %770 = vmatpush2.msra.mxu0 0.0
        %771 = vmatprep.subr.mxu0 0.0
        %772 = vmatpush2.msra.mxu0 0.0
        %773 = vmatprep.subr.mxu0 0.0
        %774 = vmatpush2.msra.mxu0 0.0
        %775 = vmatprep.subr.mxu0 0.0
        %776 = vmatpush2.msra.mxu0 0.0
        %777 = vmatprep.mubr.f32.mxu0 0.0
        %778 = vmatmul.mubr.f32.gmra.mxu0 %v331
        %v779 = vpop.f32.mrf.mxu0
        %v780 = vadd.f32 0.0, %v779
        %v781 = vpop.f32.mrf.mxu0
        %782 = vdwg.mxu0
        %v783 = vmul.f32 %v630, 0.25
        %s784 = scalar_lea.vmem %s272, 8 [#allocation2]
        %785 = vst.msk [vmem:[%s784] sm:$0xff] %vm554, %v783
        %s786 = scalar_lea.vmem %s279, 8 [#allocation4]
        %787 = vst.msk [vmem:[%s786] sm:$0xff] %vm554, %v705
        %s788 = scalar_lea.vmem %s286, 8 [#allocation6]
        %789 = vst.msk [vmem:[%s788] sm:$0xff] %vm554, %v780
        %s790 = scalar_lea.vmem %s3, 64
        %v791 = vld [vmem:[%s790] sm:$0xff]
        %v792 = vld [vmem:[%s790 + $0x8] sm:$0xff]
        %v793 = vld [vmem:[%s790 + $0x10] sm:$0xff]
        %v794 = vld [vmem:[%s790 + $0x18] sm:$0xff]
        %795 = vmatprep.subr.mxu0 0.0
        %796 = vmatpush1.msra.mxu0 0.0
        %797 = vmatprep.subr.mxu0 0.0
        %798 = vmatpush1.msra.mxu0 0.0
        %799 = vmatprep.subr.mxu0 0.0
        %800 = vmatpush1.msra.mxu0 0.0
        %801 = vmatprep.subr.mxu0 0.0
        %802 = vmatpush1.msra.mxu0 0.0
        %803 = vmatprep.subr.mxu0 0.0
        %804 = vmatpush1.msra.mxu0 0.0
        %805 = vmatprep.subr.mxu0 0.0
        %806 = vmatpush1.msra.mxu0 0.0
        %807 = vmatprep.subr.mxu0 0.0
        %808 = vmatpush1.msra.mxu0 0.0
        %809 = vmatprep.subr.mxu0 0.0
        %810 = vmatpush1.msra.mxu0 0.0
        %811 = vmatprep.subr.mxu0 0.0
        %812 = vmatpush1.msra.mxu0 0.0
        %813 = vmatprep.subr.mxu0 0.0
        %814 = vmatpush1.msra.mxu0 0.0
        %815 = vmatprep.subr.mxu0 0.0
        %816 = vmatpush1.msra.mxu0 0.0
        %817 = vmatprep.subr.mxu0 0.0
        %818 = vmatpush1.msra.mxu0 0.0
        %819 = vmatprep.subr.mxu0 0.0
        %820 = vmatpush1.msra.mxu0 %v794
        %821 = vmatprep.subr.mxu0 0.0
        %822 = vmatpush1.msra.mxu0 %v793
        %823 = vmatprep.subr.mxu0 0.0
        %824 = vmatpush1.msra.mxu0 %v792
        %825 = vmatprep.subr.mxu0 0.0
        %826 = vmatpush1.msra.mxu0 %v791
        %827 = vmatprep.subr.mxu0 0.0
        %828 = vmatpush2.msra.mxu0 0.0
        %829 = vmatprep.subr.mxu0 0.0
        %830 = vmatpush2.msra.mxu0 0.0
        %831 = vmatprep.subr.mxu0 0.0
        %832 = vmatpush2.msra.mxu0 0.0
        %833 = vmatprep.subr.mxu0 0.0
        %834 = vmatpush2.msra.mxu0 0.0
        %835 = vmatprep.subr.mxu0 0.0
        %836 = vmatpush2.msra.mxu0 0.0
        %837 = vmatprep.subr.mxu0 0.0
        %838 = vmatpush2.msra.mxu0 0.0
        %839 = vmatprep.subr.mxu0 0.0
        %840 = vmatpush2.msra.mxu0 0.0
        %841 = vmatprep.subr.mxu0 0.0
        %842 = vmatpush2.msra.mxu0 0.0
        %843 = vmatprep.subr.mxu0 0.0
        %844 = vmatpush2.msra.mxu0 0.0
        %845 = vmatprep.subr.mxu0 0.0
        %846 = vmatpush2.msra.mxu0 0.0
        %847 = vmatprep.subr.mxu0 0.0
        %848 = vmatpush2.msra.mxu0 0.0
        %849 = vmatprep.subr.mxu0 0.0
        %850 = vmatpush2.msra.mxu0 0.0
        %851 = vmatprep.subr.mxu0 0.0
        %852 = vmatpush2.msra.mxu0 0.0
        %853 = vmatprep.subr.mxu0 0.0
        %854 = vmatpush2.msra.mxu0 0.0
        %855 = vmatprep.subr.mxu0 0.0
        %856 = vmatpush2.msra.mxu0 0.0
        %857 = vmatprep.subr.mxu0 0.0
        %858 = vmatpush2.msra.mxu0 0.0
        %859 = vmatprep.mubr.f32.mxu0 0.0
        %860 = vmatmul.mubr.f32.gmra.mxu0 %v331
        %v861 = vpop.f32.mrf.mxu0
        %v862 = vadd.f32 0.0, %v861
        %v863 = vpop.f32.mrf.mxu0
        %864 = vdwg.mxu0
        %s865 = scalar_lea.vmem %s3, 192
        %v866 = vld [vmem:[%s865] sm:$0xff]
        %v867 = vld [vmem:[%s865 + $0x8] sm:$0xff]
        %v868 = vld [vmem:[%s865 + $0x10] sm:$0xff]
        %v869 = vld [vmem:[%s865 + $0x18] sm:$0xff]
        %870 = vmatprep.subr.mxu0 0.0
        %871 = vmatpush1.msra.mxu0 0.0
        %872 = vmatprep.subr.mxu0 0.0
        %873 = vmatpush1.msra.mxu0 0.0
        %874 = vmatprep.subr.mxu0 0.0
        %875 = vmatpush1.msra.mxu0 0.0
        %876 = vmatprep.subr.mxu0 0.0
        %877 = vmatpush1.msra.mxu0 0.0
        %878 = vmatprep.subr.mxu0 0.0
        %879 = vmatpush1.msra.mxu0 0.0
        %880 = vmatprep.subr.mxu0 0.0
        %881 = vmatpush1.msra.mxu0 0.0
        %882 = vmatprep.subr.mxu0 0.0
        %883 = vmatpush1.msra.mxu0 0.0
        %884 = vmatprep.subr.mxu0 0.0
        %885 = vmatpush1.msra.mxu0 0.0
        %886 = vmatprep.subr.mxu0 0.0
        %887 = vmatpush1.msra.mxu0 0.0
        %888 = vmatprep.subr.mxu0 0.0
        %889 = vmatpush1.msra.mxu0 0.0
        %890 = vmatprep.subr.mxu0 0.0
        %891 = vmatpush1.msra.mxu0 0.0
        %892 = vmatprep.subr.mxu0 0.0
        %893 = vmatpush1.msra.mxu0 0.0
        %894 = vmatprep.subr.mxu0 0.0
        %895 = vmatpush1.msra.mxu0 %v869
        %896 = vmatprep.subr.mxu0 0.0
        %897 = vmatpush1.msra.mxu0 %v868
        %898 = vmatprep.subr.mxu0 0.0
        %899 = vmatpush1.msra.mxu0 %v867
        %900 = vmatprep.subr.mxu0 0.0
        %901 = vmatpush1.msra.mxu0 %v866
        %902 = vmatprep.subr.mxu0 0.0
        %903 = vmatpush2.msra.mxu0 0.0
        %904 = vmatprep.subr.mxu0 0.0
        %905 = vmatpush2.msra.mxu0 0.0
        %906 = vmatprep.subr.mxu0 0.0
        %907 = vmatpush2.msra.mxu0 0.0
        %908 = vmatprep.subr.mxu0 0.0
        %909 = vmatpush2.msra.mxu0 0.0
        %910 = vmatprep.subr.mxu0 0.0
        %911 = vmatpush2.msra.mxu0 0.0
        %912 = vmatprep.subr.mxu0 0.0
        %913 = vmatpush2.msra.mxu0 0.0
        %914 = vmatprep.subr.mxu0 0.0
        %915 = vmatpush2.msra.mxu0 0.0
        %916 = vmatprep.subr.mxu0 0.0
        %917 = vmatpush2.msra.mxu0 0.0
        %918 = vmatprep.subr.mxu0 0.0
        %919 = vmatpush2.msra.mxu0 0.0
        %920 = vmatprep.subr.mxu0 0.0
        %921 = vmatpush2.msra.mxu0 0.0
        %922 = vmatprep.subr.mxu0 0.0
        %923 = vmatpush2.msra.mxu0 0.0
        %924 = vmatprep.subr.mxu0 0.0
        %925 = vmatpush2.msra.mxu0 0.0
        %926 = vmatprep.subr.mxu0 0.0
        %927 = vmatpush2.msra.mxu0 0.0
        %928 = vmatprep.subr.mxu0 0.0
        %929 = vmatpush2.msra.mxu0 0.0
        %930 = vmatprep.subr.mxu0 0.0
        %931 = vmatpush2.msra.mxu0 0.0
        %932 = vmatprep.subr.mxu0 0.0
        %933 = vmatpush2.msra.mxu0 0.0
        %934 = vmatprep.mubr.f32.mxu0 0.0
        %935 = vmatmul.mubr.f32.gmra.mxu0 %v331
        %v936 = vpop.f32.mrf.mxu0
        %v937 = vadd.f32 0.0, %v936
        %v938 = vpop.f32.mrf.mxu0
        %939 = vdwg.mxu0
        %s940 = scalar_lea.vmem %s3, 320
        %v941 = vld [vmem:[%s940] sm:$0xff]
        %v942 = vld [vmem:[%s940 + $0x8] sm:$0xff]
        %v943 = vld [vmem:[%s940 + $0x10] sm:$0xff]
        %v944 = vld [vmem:[%s940 + $0x18] sm:$0xff]
        %945 = vmatprep.subr.mxu0 0.0
        %946 = vmatpush1.msra.mxu0 0.0
        %947 = vmatprep.subr.mxu0 0.0
        %948 = vmatpush1.msra.mxu0 0.0
        %949 = vmatprep.subr.mxu0 0.0
        %950 = vmatpush1.msra.mxu0 0.0
        %951 = vmatprep.subr.mxu0 0.0
        %952 = vmatpush1.msra.mxu0 0.0
        %953 = vmatprep.subr.mxu0 0.0
        %954 = vmatpush1.msra.mxu0 0.0
        %955 = vmatprep.subr.mxu0 0.0
        %956 = vmatpush1.msra.mxu0 0.0
        %957 = vmatprep.subr.mxu0 0.0
        %958 = vmatpush1.msra.mxu0 0.0
        %959 = vmatprep.subr.mxu0 0.0
        %960 = vmatpush1.msra.mxu0 0.0
        %961 = vmatprep.subr.mxu0 0.0
        %962 = vmatpush1.msra.mxu0 0.0
        %963 = vmatprep.subr.mxu0 0.0
        %964 = vmatpush1.msra.mxu0 0.0
        %965 = vmatprep.subr.mxu0 0.0
        %966 = vmatpush1.msra.mxu0 0.0
        %967 = vmatprep.subr.mxu0 0.0
        %968 = vmatpush1.msra.mxu0 0.0
        %969 = vmatprep.subr.mxu0 0.0
        %970 = vmatpush1.msra.mxu0 %v944
        %971 = vmatprep.subr.mxu0 0.0
        %972 = vmatpush1.msra.mxu0 %v943
        %973 = vmatprep.subr.mxu0 0.0
        %974 = vmatpush1.msra.mxu0 %v942
        %975 = vmatprep.subr.mxu0 0.0
        %976 = vmatpush1.msra.mxu0 %v941
        %977 = vmatprep.subr.mxu0 0.0
        %978 = vmatpush2.msra.mxu0 0.0
        %979 = vmatprep.subr.mxu0 0.0
        %980 = vmatpush2.msra.mxu0 0.0
        %981 = vmatprep.subr.mxu0 0.0
        %982 = vmatpush2.msra.mxu0 0.0
        %983 = vmatprep.subr.mxu0 0.0
        %984 = vmatpush2.msra.mxu0 0.0
        %985 = vmatprep.subr.mxu0 0.0
        %986 = vmatpush2.msra.mxu0 0.0
        %987 = vmatprep.subr.mxu0 0.0
        %988 = vmatpush2.msra.mxu0 0.0
        %989 = vmatprep.subr.mxu0 0.0
        %990 = vmatpush2.msra.mxu0 0.0
        %991 = vmatprep.subr.mxu0 0.0
        %992 = vmatpush2.msra.mxu0 0.0
        %993 = vmatprep.subr.mxu0 0.0
        %994 = vmatpush2.msra.mxu0 0.0
        %995 = vmatprep.subr.mxu0 0.0
        %996 = vmatpush2.msra.mxu0 0.0
        %997 = vmatprep.subr.mxu0 0.0
        %998 = vmatpush2.msra.mxu0 0.0
        %999 = vmatprep.subr.mxu0 0.0
        %1000 = vmatpush2.msra.mxu0 0.0
        %1001 = vmatprep.subr.mxu0 0.0
        %1002 = vmatpush2.msra.mxu0 0.0
        %1003 = vmatprep.subr.mxu0 0.0
        %1004 = vmatpush2.msra.mxu0 0.0
        %1005 = vmatprep.subr.mxu0 0.0
        %1006 = vmatpush2.msra.mxu0 0.0
        %1007 = vmatprep.subr.mxu0 0.0
        %1008 = vmatpush2.msra.mxu0 0.0
        %1009 = vmatprep.mubr.f32.mxu0 0.0
        %1010 = vmatmul.mubr.f32.gmra.mxu0 %v331
        %v1011 = vpop.f32.mrf.mxu0
        %v1012 = vadd.f32 0.0, %v1011
        %v1013 = vpop.f32.mrf.mxu0
        %1014 = vdwg.mxu0
        %v1015 = vmul.f32 %v862, 0.25
        %s1016 = scalar_lea.vmem %s272, 16 [#allocation2]
        %1017 = vst.msk [vmem:[%s1016] sm:$0xff] %vm554, %v1015
        %s1018 = scalar_lea.vmem %s279, 16 [#allocation4]
        %1019 = vst.msk [vmem:[%s1018] sm:$0xff] %vm554, %v937
        %s1020 = scalar_lea.vmem %s286, 16 [#allocation6]
        %1021 = vst.msk [vmem:[%s1020] sm:$0xff] %vm554, %v1012
        %s1022 = scalar_lea.vmem %s3, 96
        %v1023 = vld [vmem:[%s1022] sm:$0xff]
        %v1024 = vld [vmem:[%s1022 + $0x8] sm:$0xff]
        %v1025 = vld [vmem:[%s1022 + $0x10] sm:$0xff]
        %v1026 = vld [vmem:[%s1022 + $0x18] sm:$0xff]
        %1027 = vmatprep.subr.mxu0 0.0
        %1028 = vmatpush1.msra.mxu0 0.0
        %1029 = vmatprep.subr.mxu0 0.0
        %1030 = vmatpush1.msra.mxu0 0.0
        %1031 = vmatprep.subr.mxu0 0.0
        %1032 = vmatpush1.msra.mxu0 0.0
        %1033 = vmatprep.subr.mxu0 0.0
        %1034 = vmatpush1.msra.mxu0 0.0
        %1035 = vmatprep.subr.mxu0 0.0
        %1036 = vmatpush1.msra.mxu0 0.0
        %1037 = vmatprep.subr.mxu0 0.0
        %1038 = vmatpush1.msra.mxu0 0.0
        %1039 = vmatprep.subr.mxu0 0.0
        %1040 = vmatpush1.msra.mxu0 0.0
        %1041 = vmatprep.subr.mxu0 0.0
        %1042 = vmatpush1.msra.mxu0 0.0
        %1043 = vmatprep.subr.mxu0 0.0
        %1044 = vmatpush1.msra.mxu0 0.0
        %1045 = vmatprep.subr.mxu0 0.0
        %1046 = vmatpush1.msra.mxu0 0.0
        %1047 = vmatprep.subr.mxu0 0.0
        %1048 = vmatpush1.msra.mxu0 0.0
        %1049 = vmatprep.subr.mxu0 0.0
        %1050 = vmatpush1.msra.mxu0 0.0
        %1051 = vmatprep.subr.mxu0 0.0
        %1052 = vmatpush1.msra.mxu0 %v1026
        %1053 = vmatprep.subr.mxu0 0.0
        %1054 = vmatpush1.msra.mxu0 %v1025
        %1055 = vmatprep.subr.mxu0 0.0
        %1056 = vmatpush1.msra.mxu0 %v1024
        %1057 = vmatprep.subr.mxu0 0.0
        %1058 = vmatpush1.msra.mxu0 %v1023
        %1059 = vmatprep.subr.mxu0 0.0
        %1060 = vmatpush2.msra.mxu0 0.0
        %1061 = vmatprep.subr.mxu0 0.0
        %1062 = vmatpush2.msra.mxu0 0.0
        %1063 = vmatprep.subr.mxu0 0.0
        %1064 = vmatpush2.msra.mxu0 0.0
        %1065 = vmatprep.subr.mxu0 0.0
        %1066 = vmatpush2.msra.mxu0 0.0
        %1067 = vmatprep.subr.mxu0 0.0
        %1068 = vmatpush2.msra.mxu0 0.0
        %1069 = vmatprep.subr.mxu0 0.0
        %1070 = vmatpush2.msra.mxu0 0.0
        %1071 = vmatprep.subr.mxu0 0.0
        %1072 = vmatpush2.msra.mxu0 0.0
        %1073 = vmatprep.subr.mxu0 0.0
        %1074 = vmatpush2.msra.mxu0 0.0
        %1075 = vmatprep.subr.mxu0 0.0
        %1076 = vmatpush2.msra.mxu0 0.0
        %1077 = vmatprep.subr.mxu0 0.0
        %1078 = vmatpush2.msra.mxu0 0.0
        %1079 = vmatprep.subr.mxu0 0.0
        %1080 = vmatpush2.msra.mxu0 0.0
        %1081 = vmatprep.subr.mxu0 0.0
        %1082 = vmatpush2.msra.mxu0 0.0
        %1083 = vmatprep.subr.mxu0 0.0
        %1084 = vmatpush2.msra.mxu0 0.0
        %1085 = vmatprep.subr.mxu0 0.0
        %1086 = vmatpush2.msra.mxu0 0.0
        %1087 = vmatprep.subr.mxu0 0.0
        %1088 = vmatpush2.msra.mxu0 0.0
        %1089 = vmatprep.subr.mxu0 0.0
        %1090 = vmatpush2.msra.mxu0 0.0
        %1091 = vmatprep.mubr.f32.mxu0 0.0
        %1092 = vmatmul.mubr.f32.gmra.mxu0 %v331
        %v1093 = vpop.f32.mrf.mxu0
        %v1094 = vadd.f32 0.0, %v1093
        %v1095 = vpop.f32.mrf.mxu0
        %1096 = vdwg.mxu0
        %s1097 = scalar_lea.vmem %s3, 224
        %v1098 = vld [vmem:[%s1097] sm:$0xff]
        %v1099 = vld [vmem:[%s1097 + $0x8] sm:$0xff]
        %v1100 = vld [vmem:[%s1097 + $0x10] sm:$0xff]
        %v1101 = vld [vmem:[%s1097 + $0x18] sm:$0xff]
        %1102 = vmatprep.subr.mxu0 0.0
        %1103 = vmatpush1.msra.mxu0 0.0
        %1104 = vmatprep.subr.mxu0 0.0
        %1105 = vmatpush1.msra.mxu0 0.0
        %1106 = vmatprep.subr.mxu0 0.0
        %1107 = vmatpush1.msra.mxu0 0.0
        %1108 = vmatprep.subr.mxu0 0.0
        %1109 = vmatpush1.msra.mxu0 0.0
        %1110 = vmatprep.subr.mxu0 0.0
        %1111 = vmatpush1.msra.mxu0 0.0
        %1112 = vmatprep.subr.mxu0 0.0
        %1113 = vmatpush1.msra.mxu0 0.0
        %1114 = vmatprep.subr.mxu0 0.0
        %1115 = vmatpush1.msra.mxu0 0.0
        %1116 = vmatprep.subr.mxu0 0.0
        %1117 = vmatpush1.msra.mxu0 0.0
        %1118 = vmatprep.subr.mxu0 0.0
        %1119 = vmatpush1.msra.mxu0 0.0
        %1120 = vmatprep.subr.mxu0 0.0
        %1121 = vmatpush1.msra.mxu0 0.0
        %1122 = vmatprep.subr.mxu0 0.0
        %1123 = vmatpush1.msra.mxu0 0.0
        %1124 = vmatprep.subr.mxu0 0.0
        %1125 = vmatpush1.msra.mxu0 0.0
        %1126 = vmatprep.subr.mxu0 0.0
        %1127 = vmatpush1.msra.mxu0 %v1101
        %1128 = vmatprep.subr.mxu0 0.0
        %1129 = vmatpush1.msra.mxu0 %v1100
        %1130 = vmatprep.subr.mxu0 0.0
        %1131 = vmatpush1.msra.mxu0 %v1099
        %1132 = vmatprep.subr.mxu0 0.0
        %1133 = vmatpush1.msra.mxu0 %v1098
        %1134 = vmatprep.subr.mxu0 0.0
        %1135 = vmatpush2.msra.mxu0 0.0
        %1136 = vmatprep.subr.mxu0 0.0
        %1137 = vmatpush2.msra.mxu0 0.0
        %1138 = vmatprep.subr.mxu0 0.0
        %1139 = vmatpush2.msra.mxu0 0.0
        %1140 = vmatprep.subr.mxu0 0.0
        %1141 = vmatpush2.msra.mxu0 0.0
        %1142 = vmatprep.subr.mxu0 0.0
        %1143 = vmatpush2.msra.mxu0 0.0
        %1144 = vmatprep.subr.mxu0 0.0
        %1145 = vmatpush2.msra.mxu0 0.0
        %1146 = vmatprep.subr.mxu0 0.0
        %1147 = vmatpush2.msra.mxu0 0.0
        %1148 = vmatprep.subr.mxu0 0.0
        %1149 = vmatpush2.msra.mxu0 0.0
        %1150 = vmatprep.subr.mxu0 0.0
        %1151 = vmatpush2.msra.mxu0 0.0
        %1152 = vmatprep.subr.mxu0 0.0
        %1153 = vmatpush2.msra.mxu0 0.0
        %1154 = vmatprep.subr.mxu0 0.0
        %1155 = vmatpush2.msra.mxu0 0.0
        %1156 = vmatprep.subr.mxu0 0.0
        %1157 = vmatpush2.msra.mxu0 0.0
        %1158 = vmatprep.subr.mxu0 0.0
        %1159 = vmatpush2.msra.mxu0 0.0
        %1160 = vmatprep.subr.mxu0 0.0
        %1161 = vmatpush2.msra.mxu0 0.0
        %1162 = vmatprep.subr.mxu0 0.0
        %1163 = vmatpush2.msra.mxu0 0.0
        %1164 = vmatprep.subr.mxu0 0.0
        %1165 = vmatpush2.msra.mxu0 0.0
        %1166 = vmatprep.mubr.f32.mxu0 0.0
        %1167 = vmatmul.mubr.f32.gmra.mxu0 %v331
        %v1168 = vpop.f32.mrf.mxu0
        %v1169 = vadd.f32 0.0, %v1168
        %v1170 = vpop.f32.mrf.mxu0
        %1171 = vdwg.mxu0
        %s1172 = scalar_lea.vmem %s3, 352
        %v1173 = vld [vmem:[%s1172] sm:$0xff]
        %v1174 = vld [vmem:[%s1172 + $0x8] sm:$0xff]
        %v1175 = vld [vmem:[%s1172 + $0x10] sm:$0xff]
        %v1176 = vld [vmem:[%s1172 + $0x18] sm:$0xff]
        %1177 = vmatprep.subr.mxu0 0.0
        %1178 = vmatpush1.msra.mxu0 0.0
        %1179 = vmatprep.subr.mxu0 0.0
        %1180 = vmatpush1.msra.mxu0 0.0
        %1181 = vmatprep.subr.mxu0 0.0
        %1182 = vmatpush1.msra.mxu0 0.0
        %1183 = vmatprep.subr.mxu0 0.0
        %1184 = vmatpush1.msra.mxu0 0.0
        %1185 = vmatprep.subr.mxu0 0.0
        %1186 = vmatpush1.msra.mxu0 0.0
        %1187 = vmatprep.subr.mxu0 0.0
        %1188 = vmatpush1.msra.mxu0 0.0
        %1189 = vmatprep.subr.mxu0 0.0
        %1190 = vmatpush1.msra.mxu0 0.0
        %1191 = vmatprep.subr.mxu0 0.0
        %1192 = vmatpush1.msra.mxu0 0.0
        %1193 = vmatprep.subr.mxu0 0.0
        %1194 = vmatpush1.msra.mxu0 0.0
        %1195 = vmatprep.subr.mxu0 0.0
        %1196 = vmatpush1.msra.mxu0 0.0
        %1197 = vmatprep.subr.mxu0 0.0
        %1198 = vmatpush1.msra.mxu0 0.0
        %1199 = vmatprep.subr.mxu0 0.0
        %1200 = vmatpush1.msra.mxu0 0.0
        %1201 = vmatprep.subr.mxu0 0.0
        %1202 = vmatpush1.msra.mxu0 %v1176
        %1203 = vmatprep.subr.mxu0 0.0
        %1204 = vmatpush1.msra.mxu0 %v1175
        %1205 = vmatprep.subr.mxu0 0.0
        %1206 = vmatpush1.msra.mxu0 %v1174
        %1207 = vmatprep.subr.mxu0 0.0
        %1208 = vmatpush1.msra.mxu0 %v1173
        %1209 = vmatprep.subr.mxu0 0.0
        %1210 = vmatpush2.msra.mxu0 0.0
        %1211 = vmatprep.subr.mxu0 0.0
        %1212 = vmatpush2.msra.mxu0 0.0
        %1213 = vmatprep.subr.mxu0 0.0
        %1214 = vmatpush2.msra.mxu0 0.0
        %1215 = vmatprep.subr.mxu0 0.0
        %1216 = vmatpush2.msra.mxu0 0.0
        %1217 = vmatprep.subr.mxu0 0.0
        %1218 = vmatpush2.msra.mxu0 0.0
        %1219 = vmatprep.subr.mxu0 0.0
        %1220 = vmatpush2.msra.mxu0 0.0
        %1221 = vmatprep.subr.mxu0 0.0
        %1222 = vmatpush2.msra.mxu0 0.0
        %1223 = vmatprep.subr.mxu0 0.0
        %1224 = vmatpush2.msra.mxu0 0.0
        %1225 = vmatprep.subr.mxu0 0.0
        %1226 = vmatpush2.msra.mxu0 0.0
        %1227 = vmatprep.subr.mxu0 0.0
        %1228 = vmatpush2.msra.mxu0 0.0
        %1229 = vmatprep.subr.mxu0 0.0
        %1230 = vmatpush2.msra.mxu0 0.0
        %1231 = vmatprep.subr.mxu0 0.0
        %1232 = vmatpush2.msra.mxu0 0.0
        %1233 = vmatprep.subr.mxu0 0.0
        %1234 = vmatpush2.msra.mxu0 0.0
        %1235 = vmatprep.subr.mxu0 0.0
        %1236 = vmatpush2.msra.mxu0 0.0
        %1237 = vmatprep.subr.mxu0 0.0
        %1238 = vmatpush2.msra.mxu0 0.0
        %1239 = vmatprep.subr.mxu0 0.0
        %1240 = vmatpush2.msra.mxu0 0.0
        %1241 = vmatprep.mubr.f32.mxu0 0.0
        %1242 = vmatmul.mubr.f32.gmra.mxu0 %v331
        %v1243 = vpop.f32.mrf.mxu0
        %v1244 = vadd.f32 0.0, %v1243
        %v1245 = vpop.f32.mrf.mxu0
        %1246 = vdwg.mxu0
        %v1247 = vmul.f32 %v1094, 0.25
        %s1248 = scalar_lea.vmem %s272, 24 [#allocation2]
        %1249 = vst.msk [vmem:[%s1248] sm:$0xff] %vm554, %v1247
        %s1250 = scalar_lea.vmem %s279, 24 [#allocation4]
        %1251 = vst.msk [vmem:[%s1250] sm:$0xff] %vm554, %v1169
        %s1252 = scalar_lea.vmem %s286, 24 [#allocation6]
        %1253 = vst.msk [vmem:[%s1252] sm:$0xff] %vm554, %v1244
        %s1254 = sand.u32 %s137, 1
        %s1255 = scalar_lea.sflag [#allocation3], %s1254
        %s1256 = sand.u32 %s137, 1
        %s1257 = smul.addr %s1256, 32
        %s1258 = scalar_lea.vmem [#allocation2], %s1257
        %s1259 = sand.u32 %s24, 1
        %s1260 = scalar_lea.sflag [#allocation5], %s1259
        %s1261 = sand.u32 %s165, 1
        %s1262 = smul.addr %s1261, 32
        %s1263 = scalar_lea.vmem [#allocation4], %s1262
        %s1264 = sand.u32 %s24, 1
        %s1265 = scalar_lea.sflag [#allocation5], %s1264
        %s1266 = sand.u32 %s193, 1
        %s1267 = smul.addr %s1266, 32
        %s1268 = scalar_lea.vmem [#allocation6], %s1267
        // Predicated region
        $region37: #{tpu_custom_call.1} parent=35 // pred_check
          %p1269 = pneg %p147
        $region38: #{tpu_custom_call.1} parent=35 // pred_check_branch
          %1271 = sbr.rel (%p1269) target = $region40
        $region39: #{tpu_custom_call.1} parent=35 // pred_region
          %s1273 = ssub.s32 512, 512
          %1274 = vsyncadd %s1255, %s1273
          %s1275 = smul.addr %s28, 4
          %s1276 = sadd.s32 %s29, %s1275
          %s1277 = smul.addr %s1276, 128
          %s1278 = scalar_lea.hbm %s4, %s1277
          %s1279 = sshll.u32 %s1258, 4
          %s1280 = int_to_ptr.vmem [resolvable:$true] %s1279
          %1285 = dma.vmem_to_hbm [thread:$0]  %s1280, 512, %s1278, %s1255, 128, 128, 8
        $region40: #{tpu_custom_call.1} parent=35 // pred_fallthru
          _
        // Predicated region
        $region41: #{tpu_custom_call.1} parent=35 // pred_check
          %p1286 = pneg %p175
        $region42: #{tpu_custom_call.1} parent=35 // pred_check_branch
          %1288 = sbr.rel (%p1286) target = $region44
        $region43: #{tpu_custom_call.1} parent=35 // pred_region
          %s1290 = ssub.s32 512, 512
          %1291 = vsyncadd %s1260, %s1290
          %s1292 = smul.addr %s28, 4
          %s1293 = sadd.s32 %s29, %s1292
          %s1294 = smul.addr %s1293, 128
          %s1295 = scalar_lea.hbm %s5, %s1294
          %s1296 = sshll.u32 %s1263, 4
          %s1297 = int_to_ptr.vmem [resolvable:$true] %s1296
          %1302 = dma.vmem_to_hbm [thread:$0]  %s1297, 512, %s1295, %s1260, 128, 128, 8
        $region44: #{tpu_custom_call.1} parent=35 // pred_fallthru
          _
        // Predicated region
        $region45: #{tpu_custom_call.1} parent=35 // pred_check
          %p1303 = pneg %p203
        $region46: #{tpu_custom_call.1} parent=35 // pred_check_branch
          %1305 = sbr.rel (%p1303) target = $region48
        $region47: #{tpu_custom_call.1} parent=35 // pred_region
          %s1307 = ssub.s32 512, 512
          %1308 = vsyncadd %s1265, %s1307
          %s1309 = smul.addr %s28, 4
          %s1310 = sadd.s32 %s29, %s1309
          %s1311 = smul.addr %s1310, 128
          %s1312 = scalar_lea.hbm %s6, %s1311
          %s1313 = sshll.u32 %s1268, 4
          %s1314 = int_to_ptr.vmem [resolvable:$true] %s1313
          %1319 = dma.vmem_to_hbm [thread:$0]  %s1314, 512, %s1312, %s1265, 128, 128, 8
        $region48: #{tpu_custom_call.1} parent=35 // pred_fallthru
          _
      $region36: #{tpu_custom_call.1} parent=5 // pred_fallthru
        _
      %p1320 = scmp.le.s32.totalorder 2, %s19
      // Predicated region
      $region49: #{tpu_custom_call.1} parent=5 // pred_check
        %p1321 = pneg %p1320
      $region50: #{tpu_custom_call.1} parent=5 // pred_check_branch
        %1323 = sbr.rel (%p1321) target = $region52
      $region51: #{tpu_custom_call.1} parent=5 // pred_region
        %s1324 = ssub.s32 %s19, 2
        // Predicated region
        $region53: #{tpu_custom_call.1} parent=51 // pred_check
          %p1325 = pneg %p153
        $region54: #{tpu_custom_call.1} parent=51 // pred_check_branch
          %1327 = sbr.rel (%p1325) target = $region56
        $region55: #{tpu_custom_call.1} parent=51 // pred_region
          %s1328 = sand.u32 %s138, 1
          %s1329 = scalar_lea.sflag [#allocation3], %s1328
          %s1330 = sand.u32 %s138, 1
          %s1331 = smul.addr %s1330, 32
          %s1332 = scalar_lea.vmem [#allocation2], %s1331
          %1333 = dma.done %s1329, 512
        $region56: #{tpu_custom_call.1} parent=51 // pred_fallthru
          _
        // Predicated region
        $region57: #{tpu_custom_call.1} parent=51 // pred_check
          %p1334 = pneg %p181
        $region58: #{tpu_custom_call.1} parent=51 // pred_check_branch
          %1336 = sbr.rel (%p1334) target = $region60
        $region59: #{tpu_custom_call.1} parent=51 // pred_region
          %s1337 = sand.u32 %s25, 1
          %s1338 = scalar_lea.sflag [#allocation5], %s1337
          %s1339 = sand.u32 %s166, 1
          %s1340 = smul.addr %s1339, 32
          %s1341 = scalar_lea.vmem [#allocation4], %s1340
          %1342 = dma.done %s1338, 512
        $region60: #{tpu_custom_call.1} parent=51 // pred_fallthru
          _
        // Predicated region
        $region61: #{tpu_custom_call.1} parent=51 // pred_check
          %p1343 = pneg %p209
        $region62: #{tpu_custom_call.1} parent=51 // pred_check_branch
          %1345 = sbr.rel (%p1343) target = $region64
        $region63: #{tpu_custom_call.1} parent=51 // pred_region
          %s1346 = sand.u32 %s25, 1
          %s1347 = scalar_lea.sflag [#allocation5], %s1346
          %s1348 = sand.u32 %s194, 1
          %s1349 = smul.addr %s1348, 32
          %s1350 = scalar_lea.vmem [#allocation6], %s1349
          %1351 = dma.done %s1347, 512
        $region64: #{tpu_custom_call.1} parent=51 // pred_fallthru
          _
      $region52: #{tpu_custom_call.1} parent=5 // pred_fallthru
        _
    $region6: #{tpu_custom_call.1} parent=1 // loop_footer
      %s23 = sadd.s32 1, %s19
    $region7: #{tpu_custom_call.1} parent=1 // loop_footer_branch
      %18 = sbr.rel target = $region3
    $region8: #{tpu_custom_call.1} parent=1 // loop_exit
      _
    %1352 = vsyncpa [#allocation3], 1
    %s1353 = scalar_lea.sflag [#allocation3], 1
    %1354 = vsyncpa %s1353, 1
    %1355 = vsyncpa [#allocation5], 1
    %s1356 = scalar_lea.sflag [#allocation5], 1
    %1357 = vsyncpa %s1356, 1

</llo_original>
